<compile_context>
chip_gen: v7x
topology: tpu7x:2x2x1
jax: 0.10.0
libtpu: 0.0.40
codegen_flags: <defaults>
</compile_context>

<pallas_src>
import jax
import jax.numpy as jnp
from jax.experimental import pallas as pl
from jax.experimental.pallas import tpu as pltpu


# ----------------------------------------------------------------------------
# Fused Pallas kernel: 5x GCN layer + mean-pool + 2-layer MLP head
# ----------------------------------------------------------------------------
def _fused_gcnn_kernel(a_ref, p_ref, x_ref,
                       w1_ref, b1_ref, w2_ref, b2_ref, w3_ref, b3_ref,
                       w4_ref, b4_ref, w5_ref, b5_ref,
                       wo_ref, bo_ref, wo2_ref, bo2_ref,
                       out_ref):
    # A_hat is loaded once and stays resident in VMEM for all 5 layers; h
    # lives in VMEM as a traced value for the whole forward.
    a = a_ref[...]                                   # bf16 [N_pad, N_pad]
    h = x_ref[...]                                   # bf16 [N_pad, F_in_pad]

    # Five GCN layers:  h <- relu(A_hat @ (h @ W) + b)
    # (h@W first: minimizes the O(N^2 F) MXU term; bf16 MXU operands, f32 acc)
    for w_ref, b_ref in ((w1_ref, b1_ref), (w2_ref, b2_ref), (w3_ref, b3_ref),
                         (w4_ref, b4_ref), (w5_ref, b5_ref)):
        xw = jnp.dot(h, w_ref[...], preferred_element_type=jnp.float32)
        acc = jnp.dot(a, xw.astype(jnp.bfloat16),
                      preferred_element_type=jnp.float32)
        acc = jnp.maximum(acc + b_ref[...], 0.0)     # bias + relu in f32 (VPU)
        h = acc.astype(jnp.bfloat16)                 # next-layer MXU operand
        # (dropout after conv2/conv4 is identity in eval mode)

    # global_mean_pool as a matmul:  pooled = P @ h,  P[g, n] = 1/|graph g|
    pooled = jnp.dot(p_ref[...], h, preferred_element_type=jnp.float32)

    # MLP head: Linear + relu, then final Linear.  Lane dims padded to 128 so
    # the output store is one full, unmasked 128-wide store.
    o1 = jnp.maximum(
        jnp.dot(pooled.astype(jnp.bfloat16), wo_ref[...],
                preferred_element_type=jnp.float32) + bo_ref[...], 0.0)
    o2 = jnp.dot(o1.astype(jnp.bfloat16), wo2_ref[...],
                 preferred_element_type=jnp.float32) + bo2_ref[...]
    out_ref[...] = o2                                # f32 [G_pad, 128]


# ----------------------------------------------------------------------------
# Wrapper: one-time padding/cast of constants, jitted per-call path
# ----------------------------------------------------------------------------
def _round_up(v, m):
    return (v + m - 1) // m * m


def _pad2(arr, rows, cols):
    return jnp.pad(arr, ((0, rows - arr.shape[0]), (0, cols - arr.shape[1])))


_LAYER_NAMES = ("conv1", "conv2", "conv3", "conv4", "conv5", "out", "out2")


def make_gcnn_forward(params, a_hat, pool_mat):
    """Returns a jitted forward(x) -> [num_graphs, 1] float32.

    All shape-static padding and bf16 casting of params / A_hat / pool_mat is
    done here exactly once; the returned callable only pads x, launches the
    fused Pallas kernel, and slices the padded output (all inside one jit).
    """
    n = a_hat.shape[0]
    g = pool_mat.shape[0]
    n_pad = _round_up(n, 128)       # lane dim of A_hat / P, sublane dim of h
    g_pad = _round_up(g, 8)         # sublane dim of pooled / output

    # Zero-pad weights/biases to 128-multiples; math unchanged (padded rows /
    # cols contribute zeros; see the padded-column invariant in the header).
    ws, bs = [], []
    for name in _LAYER_NAMES:
        w = params[f"{name}_w"]
        b = params[f"{name}_b"]
        fi_p = _round_up(w.shape[0], 128)
        fo_p = _round_up(w.shape[1], 128)
        ws.append(_pad2(w, fi_p, fo_p).astype(jnp.bfloat16))
        bs.append(jnp.pad(b, (0, fo_p - b.shape[0]))
                  .reshape(1, fo_p).astype(jnp.float32))

    a_p = _pad2(a_hat, n_pad, n_pad).astype(jnp.bfloat16)
    p_p = _pad2(pool_mat, g_pad, n_pad).astype(jnp.bfloat16)

    fin_pad = ws[0].shape[0]        # padded input-feature dim (42 -> 128)
    fo_last = ws[-1].shape[1]       # padded head output dim (1 -> 128)

    flat_wb = []
    for w, b in zip(ws, bs):
        flat_wb += [w, b]
    flat_wb = tuple(flat_wb)

    n_inputs = 3 + len(flat_wb)     # A_hat, P, x, then 7x (W, b)

    # No grid: every operand is a full-array, single-buffered VMEM block (the
    # whole problem fits comfortably under the default scoped VMEM limit).
    vmem_spec = pl.BlockSpec(memory_space=pltpu.MemorySpace.VMEM)
    fused_call = pl.pallas_call(
        _fused_gcnn_kernel,
        out_shape=jax.ShapeDtypeStruct((g_pad, fo_last), jnp.float32),
        in_specs=[vmem_spec] * n_inputs,
        out_specs=vmem_spec,
    )

    def _forward(x, a_c, p_c, wb):
        x_p = _pad2(x, n_pad, fin_pad).astype(jnp.bfloat16)
        out_padded = fused_call(a_c, p_c, x_p, *wb)
        # Real result lives in column 0 of the first `g` rows; slicing inside
        # the same jit keeps the padded buffer from round-tripping HBM twice.
        return out_padded[:g, :1]

    fwd = jax.jit(_forward)
    return lambda x: fwd(x, a_p, p_p, flat_wb)


# ----------------------------------------------------------------------------
# Plain-JAX glue: adjacency normalization, pooling matrix, params, reference
# ----------------------------------------------------------------------------
def build_normalized_adjacency(edge_index, num_nodes):
    # PyG GCNConv: message-sum counts duplicate edges -> scatter-ADD, then add
    # self-loops only for nodes that do not already have one (gcn_norm).
    src, dst = edge_index[0], edge_index[1]
    a = jnp.zeros((num_nodes, num_nodes), jnp.float32).at[dst, src].add(1.0)
    diag = jnp.diagonal(a)
    a = a + jnp.diag(jnp.where(diag > 0, 0.0, 1.0))
    deg = a.sum(axis=1)
    d_inv_sqrt = jnp.where(deg > 0, 1.0 / jnp.sqrt(deg), 0.0)
    return d_inv_sqrt[:, None] * a * d_inv_sqrt[None, :]


def build_mean_pool_matrix(batch_index, num_graphs):
    onehot = (batch_index[None, :] == jnp.arange(num_graphs)[:, None]).astype(jnp.float32)
    counts = onehot.sum(axis=1, keepdims=True)
    return onehot / jnp.maximum(counts, 1.0)


def init_params(key, in_features, hidden):
    dims = [
        ("conv1", in_features, hidden),
        ("conv2", hidden, 2 * hidden),
        ("conv3", 2 * hidden, 3 * hidden),
        ("conv4", 3 * hidden, 2 * hidden),
        ("conv5", 2 * hidden, hidden),
        ("out", hidden, hidden // 2),
        ("out2", hidden // 2, 1),
    ]
    params = {}
    for name, f_in, f_out in dims:
        key, kw, kb = jax.random.split(key, 3)
        scale = jnp.sqrt(6.0 / (f_in + f_out))  # glorot-uniform (synthetic init)
        params[f"{name}_w"] = jax.random.uniform(
            kw, (f_in, f_out), jnp.float32, -scale, scale)
        params[f"{name}_b"] = jax.random.uniform(
            kb, (f_out,), jnp.float32, -scale, scale)
    return params


def gcnn_reference(params, x, a_hat, pool_mat):
    # Pure-JAX f32 reference of the same forward (for a loose sanity check).
    h = x
    for name in ("conv1", "conv2", "conv3", "conv4", "conv5"):
        h = jnp.maximum(a_hat @ (h @ params[f"{name}_w"]) + params[f"{name}_b"], 0.0)
    pooled = pool_mat @ h
    o = jnp.maximum(pooled @ params["out_w"] + params["out_b"], 0.0)
    return o @ params["out2_w"] + params["out2_b"]


# ----------------------------------------------------------------------------
# Demo
# ----------------------------------------------------------------------------
if __name__ == "__main__":
    IN_FEATURES = 42          # fixed by the module: GCNConv(42, hidden)
    HIDDEN = 32               # small hidden_size for the demo (module default 150)
    NUM_NODES = 64
    NUM_EDGES = 128
    NUM_GRAPHS = 2

    key = jax.random.PRNGKey(0)
    k_x, k_e, k_p = jax.random.split(key, 3)

    # Node features [N, 42], random directed edge list [2, E], batch assignment [N].
    x = jax.random.normal(k_x, (NUM_NODES, IN_FEATURES), jnp.float32)
    edge_index = jax.random.randint(k_e, (2, NUM_EDGES), 0, NUM_NODES, jnp.int32)
    batch_index = jnp.concatenate(
        [jnp.zeros(NUM_NODES // 2, jnp.int32),
         jnp.ones(NUM_NODES - NUM_NODES // 2, jnp.int32)]
    )

    a_hat = build_normalized_adjacency(edge_index, NUM_NODES)
    pool_mat = build_mean_pool_matrix(batch_index, NUM_GRAPHS)
    params = init_params(k_p, IN_FEATURES, HIDDEN)

    forward = make_gcnn_forward(params, a_hat, pool_mat)   # one-time pad/cast
    out = forward(x)
    out = jax.block_until_ready(out)

    assert out.shape == (NUM_GRAPHS, 1) and out.dtype == jnp.float32
    assert bool(jnp.all(jnp.isfinite(out)))

    # Loose numerical check vs. f32 reference (kernel uses bf16 MXU operands).
    ref = gcnn_reference(params, x, a_hat, pool_mat)
    atol = 0.1 + 0.05 * float(jnp.max(jnp.abs(ref)))
    assert float(jnp.max(jnp.abs(out - ref))) < atol

    print("KERNEL_OK")
</pallas_src>

<mosaic_0001>
module attributes {stable_mosaic.version = 11 : i64} {
  func.func @_fused_gcnn_kernel(%arg0: memref<128x128xbf16, #tpu.memory_space<vmem>>, %arg1: memref<8x128xbf16, #tpu.memory_space<vmem>>, %arg2: memref<128x128xbf16, #tpu.memory_space<vmem>>, %arg3: memref<128x128xbf16, #tpu.memory_space<vmem>>, %arg4: memref<1x128xf32, #tpu.memory_space<vmem>>, %arg5: memref<128x128xbf16, #tpu.memory_space<vmem>>, %arg6: memref<1x128xf32, #tpu.memory_space<vmem>>, %arg7: memref<128x128xbf16, #tpu.memory_space<vmem>>, %arg8: memref<1x128xf32, #tpu.memory_space<vmem>>, %arg9: memref<128x128xbf16, #tpu.memory_space<vmem>>, %arg10: memref<1x128xf32, #tpu.memory_space<vmem>>, %arg11: memref<128x128xbf16, #tpu.memory_space<vmem>>, %arg12: memref<1x128xf32, #tpu.memory_space<vmem>>, %arg13: memref<128x128xbf16, #tpu.memory_space<vmem>>, %arg14: memref<1x128xf32, #tpu.memory_space<vmem>>, %arg15: memref<128x128xbf16, #tpu.memory_space<vmem>>, %arg16: memref<1x128xf32, #tpu.memory_space<vmem>>, %arg17: memref<8x128xf32, #tpu.memory_space<vmem>>) attributes {dimension_semantics = [], scalar_prefetch = 0 : i64, scratch_operands = 0 : i64, tpu.core_type = #tpu.core_type<tc>} {
    %c0 = arith.constant 0 : index
    %c0_0 = arith.constant 0 : index
    %0 = vector.load %arg0[%c0, %c0_0] : memref<128x128xbf16, #tpu.memory_space<vmem>>, vector<128x128xbf16>
    %c0_1 = arith.constant 0 : index
    %c0_2 = arith.constant 0 : index
    %1 = vector.load %arg2[%c0_1, %c0_2] : memref<128x128xbf16, #tpu.memory_space<vmem>>, vector<128x128xbf16>
    %c0_3 = arith.constant 0 : index
    %c0_4 = arith.constant 0 : index
    %2 = vector.load %arg3[%c0_3, %c0_4] : memref<128x128xbf16, #tpu.memory_space<vmem>>, vector<128x128xbf16>
    %cst = arith.constant dense<0.000000e+00> : vector<128x128xf32>
    %3 = tpu.matmul %1, %2, %cst {dimension_numbers = #tpu.dot_dimension_numbers<[1], [0], [0], [1], [0, 0, 1, 1], [], []>} : vector<128x128xbf16>, vector<128x128xbf16>, vector<128x128xf32> -> vector<128x128xf32>
    %4 = arith.truncf %3 : vector<128x128xf32> to vector<128x128xbf16>
    %cst_5 = arith.constant dense<0.000000e+00> : vector<128x128xf32>
    %5 = tpu.matmul %0, %4, %cst_5 {dimension_numbers = #tpu.dot_dimension_numbers<[1], [0], [0], [1], [0, 0, 1, 1], [], []>} : vector<128x128xbf16>, vector<128x128xbf16>, vector<128x128xf32> -> vector<128x128xf32>
    %c0_6 = arith.constant 0 : index
    %c0_7 = arith.constant 0 : index
    %6 = vector.load %arg4[%c0_6, %c0_7] : memref<1x128xf32, #tpu.memory_space<vmem>>, vector<1x128xf32>
    %7 = vector.broadcast %6 : vector<1x128xf32> to vector<128x128xf32>
    %8 = arith.addf %5, %7 : vector<128x128xf32>
    %cst_8 = arith.constant 0.000000e+00 : f32
    %9 = vector.broadcast %cst_8 : f32 to vector<128x128xf32>
    %10 = arith.maximumf %8, %9 : vector<128x128xf32>
    %11 = arith.truncf %10 : vector<128x128xf32> to vector<128x128xbf16>
    %c0_9 = arith.constant 0 : index
    %c0_10 = arith.constant 0 : index
    %12 = vector.load %arg5[%c0_9, %c0_10] : memref<128x128xbf16, #tpu.memory_space<vmem>>, vector<128x128xbf16>
    %cst_11 = arith.constant dense<0.000000e+00> : vector<128x128xf32>
    %13 = tpu.matmul %11, %12, %cst_11 {dimension_numbers = #tpu.dot_dimension_numbers<[1], [0], [0], [1], [0, 0, 1, 1], [], []>} : vector<128x128xbf16>, vector<128x128xbf16>, vector<128x128xf32> -> vector<128x128xf32>
    %14 = arith.truncf %13 : vector<128x128xf32> to vector<128x128xbf16>
    %cst_12 = arith.constant dense<0.000000e+00> : vector<128x128xf32>
    %15 = tpu.matmul %0, %14, %cst_12 {dimension_numbers = #tpu.dot_dimension_numbers<[1], [0], [0], [1], [0, 0, 1, 1], [], []>} : vector<128x128xbf16>, vector<128x128xbf16>, vector<128x128xf32> -> vector<128x128xf32>
    %c0_13 = arith.constant 0 : index
    %c0_14 = arith.constant 0 : index
    %16 = vector.load %arg6[%c0_13, %c0_14] : memref<1x128xf32, #tpu.memory_space<vmem>>, vector<1x128xf32>
    %17 = vector.broadcast %16 : vector<1x128xf32> to vector<128x128xf32>
    %18 = arith.addf %15, %17 : vector<128x128xf32>
    %cst_15 = arith.constant 0.000000e+00 : f32
    %19 = vector.broadcast %cst_15 : f32 to vector<128x128xf32>
    %20 = arith.maximumf %18, %19 : vector<128x128xf32>
    %21 = arith.truncf %20 : vector<128x128xf32> to vector<128x128xbf16>
    %c0_16 = arith.constant 0 : index
    %c0_17 = arith.constant 0 : index
    %22 = vector.load %arg7[%c0_16, %c0_17] : memref<128x128xbf16, #tpu.memory_space<vmem>>, vector<128x128xbf16>
    %cst_18 = arith.constant dense<0.000000e+00> : vector<128x128xf32>
    %23 = tpu.matmul %21, %22, %cst_18 {dimension_numbers = #tpu.dot_dimension_numbers<[1], [0], [0], [1], [0, 0, 1, 1], [], []>} : vector<128x128xbf16>, vector<128x128xbf16>, vector<128x128xf32> -> vector<128x128xf32>
    %24 = arith.truncf %23 : vector<128x128xf32> to vector<128x128xbf16>
    %cst_19 = arith.constant dense<0.000000e+00> : vector<128x128xf32>
    %25 = tpu.matmul %0, %24, %cst_19 {dimension_numbers = #tpu.dot_dimension_numbers<[1], [0], [0], [1], [0, 0, 1, 1], [], []>} : vector<128x128xbf16>, vector<128x128xbf16>, vector<128x128xf32> -> vector<128x128xf32>
    %c0_20 = arith.constant 0 : index
    %c0_21 = arith.constant 0 : index
    %26 = vector.load %arg8[%c0_20, %c0_21] : memref<1x128xf32, #tpu.memory_space<vmem>>, vector<1x128xf32>
    %27 = vector.broadcast %26 : vector<1x128xf32> to vector<128x128xf32>
    %28 = arith.addf %25, %27 : vector<128x128xf32>
    %cst_22 = arith.constant 0.000000e+00 : f32
    %29 = vector.broadcast %cst_22 : f32 to vector<128x128xf32>
    %30 = arith.maximumf %28, %29 : vector<128x128xf32>
    %31 = arith.truncf %30 : vector<128x128xf32> to vector<128x128xbf16>
    %c0_23 = arith.constant 0 : index
    %c0_24 = arith.constant 0 : index
    %32 = vector.load %arg9[%c0_23, %c0_24] : memref<128x128xbf16, #tpu.memory_space<vmem>>, vector<128x128xbf16>
    %cst_25 = arith.constant dense<0.000000e+00> : vector<128x128xf32>
    %33 = tpu.matmul %31, %32, %cst_25 {dimension_numbers = #tpu.dot_dimension_numbers<[1], [0], [0], [1], [0, 0, 1, 1], [], []>} : vector<128x128xbf16>, vector<128x128xbf16>, vector<128x128xf32> -> vector<128x128xf32>
    %34 = arith.truncf %33 : vector<128x128xf32> to vector<128x128xbf16>
    %cst_26 = arith.constant dense<0.000000e+00> : vector<128x128xf32>
    %35 = tpu.matmul %0, %34, %cst_26 {dimension_numbers = #tpu.dot_dimension_numbers<[1], [0], [0], [1], [0, 0, 1, 1], [], []>} : vector<128x128xbf16>, vector<128x128xbf16>, vector<128x128xf32> -> vector<128x128xf32>
    %c0_27 = arith.constant 0 : index
    %c0_28 = arith.constant 0 : index
    %36 = vector.load %arg10[%c0_27, %c0_28] : memref<1x128xf32, #tpu.memory_space<vmem>>, vector<1x128xf32>
    %37 = vector.broadcast %36 : vector<1x128xf32> to vector<128x128xf32>
    %38 = arith.addf %35, %37 : vector<128x128xf32>
    %cst_29 = arith.constant 0.000000e+00 : f32
    %39 = vector.broadcast %cst_29 : f32 to vector<128x128xf32>
    %40 = arith.maximumf %38, %39 : vector<128x128xf32>
    %41 = arith.truncf %40 : vector<128x128xf32> to vector<128x128xbf16>
    %c0_30 = arith.constant 0 : index
    %c0_31 = arith.constant 0 : index
    %42 = vector.load %arg11[%c0_30, %c0_31] : memref<128x128xbf16, #tpu.memory_space<vmem>>, vector<128x128xbf16>
    %cst_32 = arith.constant dense<0.000000e+00> : vector<128x128xf32>
    %43 = tpu.matmul %41, %42, %cst_32 {dimension_numbers = #tpu.dot_dimension_numbers<[1], [0], [0], [1], [0, 0, 1, 1], [], []>} : vector<128x128xbf16>, vector<128x128xbf16>, vector<128x128xf32> -> vector<128x128xf32>
    %44 = arith.truncf %43 : vector<128x128xf32> to vector<128x128xbf16>
    %cst_33 = arith.constant dense<0.000000e+00> : vector<128x128xf32>
    %45 = tpu.matmul %0, %44, %cst_33 {dimension_numbers = #tpu.dot_dimension_numbers<[1], [0], [0], [1], [0, 0, 1, 1], [], []>} : vector<128x128xbf16>, vector<128x128xbf16>, vector<128x128xf32> -> vector<128x128xf32>
    %c0_34 = arith.constant 0 : index
    %c0_35 = arith.constant 0 : index
    %46 = vector.load %arg12[%c0_34, %c0_35] : memref<1x128xf32, #tpu.memory_space<vmem>>, vector<1x128xf32>
    %47 = vector.broadcast %46 : vector<1x128xf32> to vector<128x128xf32>
    %48 = arith.addf %45, %47 : vector<128x128xf32>
    %cst_36 = arith.constant 0.000000e+00 : f32
    %49 = vector.broadcast %cst_36 : f32 to vector<128x128xf32>
    %50 = arith.maximumf %48, %49 : vector<128x128xf32>
    %51 = arith.truncf %50 : vector<128x128xf32> to vector<128x128xbf16>
    %c0_37 = arith.constant 0 : index
    %c0_38 = arith.constant 0 : index
    %52 = vector.load %arg1[%c0_37, %c0_38] : memref<8x128xbf16, #tpu.memory_space<vmem>>, vector<8x128xbf16>
    %cst_39 = arith.constant dense<0.000000e+00> : vector<8x128xf32>
    %53 = tpu.matmul %52, %51, %cst_39 {dimension_numbers = #tpu.dot_dimension_numbers<[1], [0], [0], [1], [0, 0, 1, 1], [], []>} : vector<8x128xbf16>, vector<128x128xbf16>, vector<8x128xf32> -> vector<8x128xf32>
    %54 = arith.truncf %53 : vector<8x128xf32> to vector<8x128xbf16>
    %c0_40 = arith.constant 0 : index
    %c0_41 = arith.constant 0 : index
    %55 = vector.load %arg13[%c0_40, %c0_41] : memref<128x128xbf16, #tpu.memory_space<vmem>>, vector<128x128xbf16>
    %cst_42 = arith.constant dense<0.000000e+00> : vector<8x128xf32>
    %56 = tpu.matmul %54, %55, %cst_42 {dimension_numbers = #tpu.dot_dimension_numbers<[1], [0], [0], [1], [0, 0, 1, 1], [], []>} : vector<8x128xbf16>, vector<128x128xbf16>, vector<8x128xf32> -> vector<8x128xf32>
    %c0_43 = arith.constant 0 : index
    %c0_44 = arith.constant 0 : index
    %57 = vector.load %arg14[%c0_43, %c0_44] : memref<1x128xf32, #tpu.memory_space<vmem>>, vector<1x128xf32>
    %58 = vector.broadcast %57 : vector<1x128xf32> to vector<8x128xf32>
    %59 = arith.addf %56, %58 : vector<8x128xf32>
    %cst_45 = arith.constant 0.000000e+00 : f32
    %60 = vector.broadcast %cst_45 : f32 to vector<8x128xf32>
    %61 = arith.maximumf %59, %60 : vector<8x128xf32>
    %62 = arith.truncf %61 : vector<8x128xf32> to vector<8x128xbf16>
    %c0_46 = arith.constant 0 : index
    %c0_47 = arith.constant 0 : index
    %63 = vector.load %arg15[%c0_46, %c0_47] : memref<128x128xbf16, #tpu.memory_space<vmem>>, vector<128x128xbf16>
    %cst_48 = arith.constant dense<0.000000e+00> : vector<8x128xf32>
    %64 = tpu.matmul %62, %63, %cst_48 {dimension_numbers = #tpu.dot_dimension_numbers<[1], [0], [0], [1], [0, 0, 1, 1], [], []>} : vector<8x128xbf16>, vector<128x128xbf16>, vector<8x128xf32> -> vector<8x128xf32>
    %c0_49 = arith.constant 0 : index
    %c0_50 = arith.constant 0 : index
    %65 = vector.load %arg16[%c0_49, %c0_50] : memref<1x128xf32, #tpu.memory_space<vmem>>, vector<1x128xf32>
    %66 = vector.broadcast %65 : vector<1x128xf32> to vector<8x128xf32>
    %67 = arith.addf %64, %66 : vector<8x128xf32>
    %c0_51 = arith.constant 0 : index
    %c0_52 = arith.constant 0 : index
    %68 = vector.load %arg17[%c0_51, %c0_52] : memref<8x128xf32, #tpu.memory_space<vmem>>, vector<8x128xf32>
    tpu.vector_store %arg17[%c0_51, %c0_52], %67 {strides = array<i32>} : memref<8x128xf32, #tpu.memory_space<vmem>>, vector<8x128xf32>,
    return
  }
}

</mosaic_0001>

<llo_original>
// kernel: _forward.1
$region0: #{_forward.1}
  #allocation0 [shape = 'u32[]', space=smem, size = 0x4, offset = 0x4, fixed_abs, tag = 'smem constant byte address 0x4 - core index']
  #allocation1 [shape = 'u32[144,128]{1,0:T(1,128)}', space=vmem, size = 0x12000, scoped, tag = 'internal scratch']
  %s0 = inlined_call_operand.vmem [shape: bf16[128,128], index: 0, kind: input, shape index: {}]
  %s1 = inlined_call_operand.hbm [shape: bf16[8,128], index: 1, kind: input, shape index: {}]
  %s2 = inlined_call_operand.vmem [shape: bf16[128,128], index: 2, kind: input, shape index: {}]
  %s3 = inlined_call_operand.vmem [shape: bf16[128,128], index: 3, kind: input, shape index: {}]
  %s4 = inlined_call_operand.vmem [shape: f32[1,128], index: 4, kind: input, shape index: {}]
  %s5 = inlined_call_operand.vmem [shape: bf16[128,128], index: 5, kind: input, shape index: {}]
  %s6 = inlined_call_operand.vmem [shape: f32[1,128], index: 6, kind: input, shape index: {}]
  %s7 = inlined_call_operand.hbm [shape: bf16[128,128], index: 7, kind: input, shape index: {}]
  %s8 = inlined_call_operand.vmem [shape: f32[1,128], index: 8, kind: input, shape index: {}]
  %s9 = inlined_call_operand.vmem [shape: bf16[128,128], index: 9, kind: input, shape index: {}]
  %s10 = inlined_call_operand.vmem [shape: f32[1,128], index: 10, kind: input, shape index: {}]
  %s11 = inlined_call_operand.hbm [shape: bf16[128,128], index: 11, kind: input, shape index: {}]
  %s12 = inlined_call_operand.vmem [shape: f32[1,128], index: 12, kind: input, shape index: {}]
  %s13 = inlined_call_operand.hbm [shape: bf16[128,128], index: 13, kind: input, shape index: {}]
  %s14 = inlined_call_operand.vmem [shape: f32[1,128], index: 14, kind: input, shape index: {}]
  %s15 = inlined_call_operand.hbm [shape: bf16[128,128], index: 15, kind: input, shape index: {}]
  %s16 = inlined_call_operand.vmem [shape: f32[1,128], index: 16, kind: input, shape index: {}]
  %s17 = inlined_call_operand.vmem [shape: f32[8,128], index: 17, kind: output, shape index: {}]
  %s18 = sld [smem:[#allocation0]]
  $region98: #{_forward.1} parent=0
    _
  %s20 = ssub.s32 1, %s18
  %s21 = scalar_select 0, %s20, %s18
  $region1: #{_forward.1} parent=0
    #allocation2 [shape = 'u8[2048]{0}', space=vmem, size = 0x800, scoped, tag = 'input window, operand 1, single buffered']
    #allocation3 [shape = 's32[1]{0}', space=sflag, size = 0x4, scoped, tag = 'scoped memory for _forward.1']
    #allocation4 [shape = 'u8[32768]{0}', space=vmem, size = 0x8000, scoped, tag = 'input window, operand 7, single buffered']
    #allocation5 [shape = 's32[1]{0}', space=sflag, size = 0x4, scoped, tag = 'scoped memory for _forward.1']
    #allocation6 [shape = 'u8[32768]{0}', space=vmem, size = 0x8000, scoped, tag = 'input window, operand 11, single buffered']
    #allocation7 [shape = 'u8[32768]{0}', space=vmem, size = 0x8000, scoped, tag = 'input window, operand 13, single buffered']
    #allocation8 [shape = 's32[1]{0}', space=sflag, size = 0x4, scoped, tag = 'scoped memory for _forward.1']
    #allocation9 [shape = 'u8[32768]{0}', space=vmem, size = 0x8000, scoped, tag = 'input window, operand 15, single buffered']
    %22 = vsyncpa [#allocation3], 0
    %23 = vsyncpa [#allocation5], 0
    %24 = vsyncpa [#allocation8], 0
    // Predicated region
    $region2: #{_forward.1} parent=1 // pred_check
      _
    $region3: #{_forward.1} parent=1 // pred_check_branch
      %26 = sbr.rel (0) target = $region5
    $region4: #{_forward.1} parent=1 // pred_region
      _
    $region5: #{_forward.1} parent=1 // pred_fallthru
      _
    // Predicated region
    $region6: #{_forward.1} parent=1 // pred_check
      _
    $region7: #{_forward.1} parent=1 // pred_check_branch
      %28 = sbr.rel (0) target = $region9
    $region8: #{_forward.1} parent=1 // pred_region
      %s30 = ssub.s32 64, 64
      %31 = vsyncadd [#allocation3], %s30
      %s33 = sshll.u32 [#allocation2], 4
      %s34 = int_to_ptr.vmem [resolvable:$true] %s33
      %36 = dma.hbm_to_vmem [thread:$0]  %s1, 64, %s34, [#allocation3]
    $region9: #{_forward.1} parent=1 // pred_fallthru
      _
    // Predicated region
    $region10: #{_forward.1} parent=1 // pred_check
      _
    $region11: #{_forward.1} parent=1 // pred_check_branch
      %38 = sbr.rel (0) target = $region13
    $region12: #{_forward.1} parent=1 // pred_region
      _
    $region13: #{_forward.1} parent=1 // pred_fallthru
      _
    // Predicated region
    $region14: #{_forward.1} parent=1 // pred_check
      _
    $region15: #{_forward.1} parent=1 // pred_check_branch
      %40 = sbr.rel (0) target = $region17
    $region16: #{_forward.1} parent=1 // pred_region
      _
    $region17: #{_forward.1} parent=1 // pred_fallthru
      _
    // Predicated region
    $region18: #{_forward.1} parent=1 // pred_check
      _
    $region19: #{_forward.1} parent=1 // pred_check_branch
      %42 = sbr.rel (0) target = $region21
    $region20: #{_forward.1} parent=1 // pred_region
      _
    $region21: #{_forward.1} parent=1 // pred_fallthru
      _
    // Predicated region
    $region22: #{_forward.1} parent=1 // pred_check
      _
    $region23: #{_forward.1} parent=1 // pred_check_branch
      %44 = sbr.rel (0) target = $region25
    $region24: #{_forward.1} parent=1 // pred_region
      _
    $region25: #{_forward.1} parent=1 // pred_fallthru
      _
    // Predicated region
    $region26: #{_forward.1} parent=1 // pred_check
      _
    $region27: #{_forward.1} parent=1 // pred_check_branch
      %46 = sbr.rel (0) target = $region29
    $region28: #{_forward.1} parent=1 // pred_region
      _
    $region29: #{_forward.1} parent=1 // pred_fallthru
      _
    // Predicated region
    $region30: #{_forward.1} parent=1 // pred_check
      _
    $region31: #{_forward.1} parent=1 // pred_check_branch
      %48 = sbr.rel (0) target = $region33
    $region32: #{_forward.1} parent=1 // pred_region
      %s50 = ssub.s32 1024, 1024
      %51 = vsyncadd [#allocation5], %s50
      %s52 = sshll.u32 [#allocation4], 4
      %s53 = int_to_ptr.vmem [resolvable:$true] %s52
      %58 = dma.hbm_to_vmem [thread:$0]  %s7, 1024, %s53, [#allocation5], 64, 64, 4
    $region33: #{_forward.1} parent=1 // pred_fallthru
      _
    // Predicated region
    $region34: #{_forward.1} parent=1 // pred_check
      _
    $region35: #{_forward.1} parent=1 // pred_check_branch
      %60 = sbr.rel (0) target = $region37
    $region36: #{_forward.1} parent=1 // pred_region
      _
    $region37: #{_forward.1} parent=1 // pred_fallthru
      _
    // Predicated region
    $region38: #{_forward.1} parent=1 // pred_check
      _
    $region39: #{_forward.1} parent=1 // pred_check_branch
      %62 = sbr.rel (0) target = $region41
    $region40: #{_forward.1} parent=1 // pred_region
      _
    $region41: #{_forward.1} parent=1 // pred_fallthru
      _
    // Predicated region
    $region42: #{_forward.1} parent=1 // pred_check
      _
    $region43: #{_forward.1} parent=1 // pred_check_branch
      %64 = sbr.rel (0) target = $region45
    $region44: #{_forward.1} parent=1 // pred_region
      _
    $region45: #{_forward.1} parent=1 // pred_fallthru
      _
    // Predicated region
    $region46: #{_forward.1} parent=1 // pred_check
      _
    $region47: #{_forward.1} parent=1 // pred_check_branch
      %66 = sbr.rel (0) target = $region49
    $region48: #{_forward.1} parent=1 // pred_region
      %s68 = ssub.s32 1024, 1024
      %69 = vsyncadd [#allocation5], %s68
      %s70 = sshll.u32 [#allocation6], 4
      %s71 = int_to_ptr.vmem [resolvable:$true] %s70
      %76 = dma.hbm_to_vmem [thread:$0]  %s11, 1024, %s71, [#allocation5], 64, 64, 4
    $region49: #{_forward.1} parent=1 // pred_fallthru
      _
    // Predicated region
    $region50: #{_forward.1} parent=1 // pred_check
      _
    $region51: #{_forward.1} parent=1 // pred_check_branch
      %78 = sbr.rel (0) target = $region53
    $region52: #{_forward.1} parent=1 // pred_region
      _
    $region53: #{_forward.1} parent=1 // pred_fallthru
      _
    // Predicated region
    $region54: #{_forward.1} parent=1 // pred_check
      _
    $region55: #{_forward.1} parent=1 // pred_check_branch
      %80 = sbr.rel (0) target = $region57
    $region56: #{_forward.1} parent=1 // pred_region
      %s82 = ssub.s32 1024, 1024
      %83 = vsyncadd [#allocation8], %s82
      %s84 = sshll.u32 [#allocation7], 4
      %s85 = int_to_ptr.vmem [resolvable:$true] %s84
      %90 = dma.hbm_to_vmem [thread:$0]  %s13, 1024, %s85, [#allocation8], 64, 64, 4
    $region57: #{_forward.1} parent=1 // pred_fallthru
      _
    // Predicated region
    $region58: #{_forward.1} parent=1 // pred_check
      _
    $region59: #{_forward.1} parent=1 // pred_check_branch
      %92 = sbr.rel (0) target = $region61
    $region60: #{_forward.1} parent=1 // pred_region
      _
    $region61: #{_forward.1} parent=1 // pred_fallthru
      _
    // Predicated region
    $region62: #{_forward.1} parent=1 // pred_check
      _
    $region63: #{_forward.1} parent=1 // pred_check_branch
      %94 = sbr.rel (0) target = $region65
    $region64: #{_forward.1} parent=1 // pred_region
      %s96 = ssub.s32 1024, 1024
      %97 = vsyncadd [#allocation8], %s96
      %s98 = sshll.u32 [#allocation9], 4
      %s99 = int_to_ptr.vmem [resolvable:$true] %s98
      %104 = dma.hbm_to_vmem [thread:$0]  %s15, 1024, %s99, [#allocation8], 64, 64, 4
    $region65: #{_forward.1} parent=1 // pred_fallthru
      _
    // Predicated region
    $region66: #{_forward.1} parent=1 // pred_check
      _
    $region67: #{_forward.1} parent=1 // pred_check_branch
      %106 = sbr.rel (0) target = $region69
    $region68: #{_forward.1} parent=1 // pred_region
      _
    $region69: #{_forward.1} parent=1 // pred_fallthru
      _
    // Predicated region
    $region70: #{_forward.1} parent=1 // pred_check
      _
    $region71: #{_forward.1} parent=1 // pred_check_branch
      %108 = sbr.rel (0) target = $region73
    $region72: #{_forward.1} parent=1 // pred_region
      %109 = dma.done [#allocation3], 64
    $region73: #{_forward.1} parent=1 // pred_fallthru
      _
    // Predicated region
    $region74: #{_forward.1} parent=1 // pred_check
      _
    $region75: #{_forward.1} parent=1 // pred_check_branch
      %111 = sbr.rel (0) target = $region77
    $region76: #{_forward.1} parent=1 // pred_region
      %112 = dma.done [#allocation5], 1024
    $region77: #{_forward.1} parent=1 // pred_fallthru
      _
    // Predicated region
    $region78: #{_forward.1} parent=1 // pred_check
      _
    $region79: #{_forward.1} parent=1 // pred_check_branch
      %114 = sbr.rel (0) target = $region81
    $region80: #{_forward.1} parent=1 // pred_region
      %115 = dma.done [#allocation5], 1024
    $region81: #{_forward.1} parent=1 // pred_fallthru
      _
    // Predicated region
    $region82: #{_forward.1} parent=1 // pred_check
      _
    $region83: #{_forward.1} parent=1 // pred_check_branch
      %117 = sbr.rel (0) target = $region85
    $region84: #{_forward.1} parent=1 // pred_region
      %118 = dma.done [#allocation8], 1024
    $region85: #{_forward.1} parent=1 // pred_fallthru
      _
    // Predicated region
    $region86: #{_forward.1} parent=1 // pred_check
      _
    $region87: #{_forward.1} parent=1 // pred_check_branch
      %120 = sbr.rel (0) target = $region89
    $region88: #{_forward.1} parent=1 // pred_region
      %121 = dma.done [#allocation8], 1024
    $region89: #{_forward.1} parent=1 // pred_fallthru
      _
    %v123 = vld [vmem:[%s0] sm:$0xf]
    %v124 = vld [vmem:[%s0 + $0x4] sm:$0xf]
    %v125 = vld [vmem:[%s0 + $0x8] sm:$0xf]
    %v126 = vld [vmem:[%s0 + $0xc] sm:$0xf]
    %v127 = vld [vmem:[%s0 + $0x10] sm:$0xf]
    %v128 = vld [vmem:[%s0 + $0x14] sm:$0xf]
    %v129 = vld [vmem:[%s0 + $0x18] sm:$0xf]
    %v130 = vld [vmem:[%s0 + $0x1c] sm:$0xf]
    %v131 = vld [vmem:[%s0 + $0x20] sm:$0xf]
    %v132 = vld [vmem:[%s0 + $0x24] sm:$0xf]
    %v133 = vld [vmem:[%s0 + $0x28] sm:$0xf]
    %v134 = vld [vmem:[%s0 + $0x2c] sm:$0xf]
    %v135 = vld [vmem:[%s0 + $0x30] sm:$0xf]
    %v136 = vld [vmem:[%s0 + $0x34] sm:$0xf]
    %v137 = vld [vmem:[%s0 + $0x38] sm:$0xf]
    %v138 = vld [vmem:[%s0 + $0x3c] sm:$0xf]
    %v139 = vld [vmem:[%s2] sm:$0xf]
    %v140 = vld [vmem:[%s2 + $0x4] sm:$0xf]
    %v141 = vld [vmem:[%s2 + $0x8] sm:$0xf]
    %v142 = vld [vmem:[%s2 + $0xc] sm:$0xf]
    %v143 = vld [vmem:[%s2 + $0x10] sm:$0xf]
    %v144 = vld [vmem:[%s2 + $0x14] sm:$0xf]
    %v145 = vld [vmem:[%s2 + $0x18] sm:$0xf]
    %v146 = vld [vmem:[%s2 + $0x1c] sm:$0xf]
    %v147 = vld [vmem:[%s2 + $0x20] sm:$0xf]
    %v148 = vld [vmem:[%s2 + $0x24] sm:$0xf]
    %v149 = vld [vmem:[%s2 + $0x28] sm:$0xf]
    %v150 = vld [vmem:[%s2 + $0x2c] sm:$0xf]
    %v151 = vld [vmem:[%s2 + $0x30] sm:$0xf]
    %v152 = vld [vmem:[%s2 + $0x34] sm:$0xf]
    %v153 = vld [vmem:[%s2 + $0x38] sm:$0xf]
    %v154 = vld [vmem:[%s2 + $0x3c] sm:$0xf]
    %v155 = vld [vmem:[%s3] sm:$0xf]
    %v156 = vld [vmem:[%s3 + $0x4] sm:$0xf]
    %v157 = vld [vmem:[%s3 + $0x8] sm:$0xf]
    %v158 = vld [vmem:[%s3 + $0xc] sm:$0xf]
    %v159 = vld [vmem:[%s3 + $0x10] sm:$0xf]
    %v160 = vld [vmem:[%s3 + $0x14] sm:$0xf]
    %v161 = vld [vmem:[%s3 + $0x18] sm:$0xf]
    %v162 = vld [vmem:[%s3 + $0x1c] sm:$0xf]
    %v163 = vld [vmem:[%s3 + $0x20] sm:$0xf]
    %v164 = vld [vmem:[%s3 + $0x24] sm:$0xf]
    %v165 = vld [vmem:[%s3 + $0x28] sm:$0xf]
    %v166 = vld [vmem:[%s3 + $0x2c] sm:$0xf]
    %v167 = vld [vmem:[%s3 + $0x30] sm:$0xf]
    %v168 = vld [vmem:[%s3 + $0x34] sm:$0xf]
    %v169 = vld [vmem:[%s3 + $0x38] sm:$0xf]
    %v170 = vld [vmem:[%s3 + $0x3c] sm:$0xf]
    %v187 = vunpack.c.l.b16 %v139
    %v188 = vunpack.c.l.b16 %v140
    %v189 = vunpack.c.l.b16 %v141
    %v190 = vunpack.c.l.b16 %v142
    %v191 = vunpack.c.l.b16 %v143
    %v192 = vunpack.c.l.b16 %v144
    %v193 = vunpack.c.l.b16 %v145
    %v194 = vunpack.c.l.b16 %v146
    %v195 = vunpack.c.l.b16 %v147
    %v196 = vunpack.c.l.b16 %v148
    %v197 = vunpack.c.l.b16 %v149
    %v198 = vunpack.c.l.b16 %v150
    %v199 = vunpack.c.l.b16 %v151
    %v200 = vunpack.c.l.b16 %v152
    %v201 = vunpack.c.l.b16 %v153
    %v202 = vunpack.c.l.b16 %v154
    %v203 = vpack.c.b16 %v188, %v187
    %v204 = vpack.c.b16 %v190, %v189
    %v205 = vpack.c.b16 %v192, %v191
    %v206 = vpack.c.b16 %v194, %v193
    %v207 = vpack.c.b16 %v196, %v195
    %v208 = vpack.c.b16 %v198, %v197
    %v209 = vpack.c.b16 %v200, %v199
    %v210 = vpack.c.b16 %v202, %v201
    %v235 = vunpack.c.l.b16 %v155
    %v236 = vunpack.c.l.b16 %v156
    %v237 = vunpack.c.l.b16 %v157
    %v238 = vunpack.c.l.b16 %v158
    %v239 = vunpack.c.l.b16 %v159
    %v240 = vunpack.c.l.b16 %v160
    %v241 = vunpack.c.l.b16 %v161
    %v242 = vunpack.c.l.b16 %v162
    %v243 = vunpack.c.l.b16 %v163
    %v244 = vunpack.c.l.b16 %v164
    %v245 = vunpack.c.l.b16 %v165
    %v246 = vunpack.c.l.b16 %v166
    %v247 = vunpack.c.l.b16 %v167
    %v248 = vunpack.c.l.b16 %v168
    %v249 = vunpack.c.l.b16 %v169
    %v250 = vunpack.c.l.b16 %v170
    %v251 = vpack.c.b16 %v236, %v235
    %v252 = vpack.c.b16 %v238, %v237
    %v253 = vpack.c.b16 %v240, %v239
    %v254 = vpack.c.b16 %v242, %v241
    %v255 = vpack.c.b16 %v244, %v243
    %v256 = vpack.c.b16 %v246, %v245
    %v257 = vpack.c.b16 %v248, %v247
    %v258 = vpack.c.b16 %v250, %v249
    %267 = vmatprep.subr.bf16.mxu0 0
    %268 = vmatpush1.bf16.msra.mxu0 %v251
    %269 = vmatprep.subr.bf16.mxu0 0
    %270 = vmatpush1.bf16.msra.mxu0 %v252
    %271 = vmatprep.subr.bf16.mxu0 0
    %272 = vmatpush1.bf16.msra.mxu0 %v253
    %273 = vmatprep.subr.bf16.mxu0 0
    %274 = vmatpush1.bf16.msra.mxu0 %v254
    %275 = vmatprep.subr.bf16.mxu0 0
    %276 = vmatpush1.bf16.msra.mxu0 %v255
    %277 = vmatprep.subr.bf16.mxu0 0
    %278 = vmatpush1.bf16.msra.mxu0 %v256
    %279 = vmatprep.subr.bf16.mxu0 0
    %280 = vmatpush1.bf16.msra.mxu0 %v257
    %281 = vmatprep.subr.bf16.mxu0 0
    %282 = vmatpush1.bf16.msra.mxu0 %v258
    %283 = vmatprep.subr.bf16.mxu0 0
    %284 = vmatpush1.bf16.msra.mxu0 0
    %285 = vmatprep.subr.bf16.mxu0 0
    %286 = vmatpush1.bf16.msra.mxu0 0
    %287 = vmatprep.subr.bf16.mxu0 0
    %288 = vmatpush1.bf16.msra.mxu0 0
    %289 = vmatprep.subr.bf16.mxu0 0
    %290 = vmatpush1.bf16.msra.mxu0 0
    %291 = vmatprep.subr.bf16.mxu0 0
    %292 = vmatpush1.bf16.msra.mxu0 0
    %293 = vmatprep.subr.bf16.mxu0 0
    %294 = vmatpush1.bf16.msra.mxu0 0
    %295 = vmatprep.subr.bf16.mxu0 0
    %296 = vmatpush1.bf16.msra.mxu0 0
    %297 = vmatprep.subr.bf16.mxu0 0
    %298 = vmatpush1.bf16.msra.mxu0 0
    %299 = vmatprep.mubr.bf16.mxu0 0
    %300 = vmatmul.mubr.bf16.gmra.mrb[0].mxu0 %v203
    %v301 = vpop.f32.mrb[0].mxu0
    %v302 = vadd.f32 0.0, %v301
    %v303 = vpop.f32.mrb[0].mxu0
    %v304 = vpop.f32.mrb[0].mxu0
    %v305 = vadd.f32 0.0, %v304
    %v306 = vpop.f32.mrb[0].mxu0
    %307 = vmatprep.mubr.bf16.mxu0 0
    %308 = vmatmul.mubr.bf16.gmra.mrb[0].mxu0 %v204
    %v309 = vpop.f32.mrb[0].mxu0
    %v310 = vadd.f32 0.0, %v309
    %v311 = vpop.f32.mrb[0].mxu0
    %v312 = vpop.f32.mrb[0].mxu0
    %v313 = vadd.f32 0.0, %v312
    %v314 = vpop.f32.mrb[0].mxu0
    %315 = vmatprep.mubr.bf16.mxu0 0
    %316 = vmatmul.mubr.bf16.gmra.mrb[0].mxu0 %v205
    %v317 = vpop.f32.mrb[0].mxu0
    %v318 = vadd.f32 0.0, %v317
    %v319 = vpop.f32.mrb[0].mxu0
    %v320 = vpop.f32.mrb[0].mxu0
    %v321 = vadd.f32 0.0, %v320
    %v322 = vpop.f32.mrb[0].mxu0
    %323 = vmatprep.mubr.bf16.mxu0 0
    %324 = vmatmul.mubr.bf16.gmra.mrb[0].mxu0 %v206
    %v325 = vpop.f32.mrb[0].mxu0
    %v326 = vadd.f32 0.0, %v325
    %v327 = vpop.f32.mrb[0].mxu0
    %v328 = vpop.f32.mrb[0].mxu0
    %v329 = vadd.f32 0.0, %v328
    %v330 = vpop.f32.mrb[0].mxu0
    %331 = vmatprep.mubr.bf16.mxu0 0
    %332 = vmatmul.mubr.bf16.gmra.mrb[0].mxu0 %v207
    %v333 = vpop.f32.mrb[0].mxu0
    %v334 = vadd.f32 0.0, %v333
    %v335 = vpop.f32.mrb[0].mxu0
    %v336 = vpop.f32.mrb[0].mxu0
    %v337 = vadd.f32 0.0, %v336
    %v338 = vpop.f32.mrb[0].mxu0
    %339 = vmatprep.mubr.bf16.mxu0 0
    %340 = vmatmul.mubr.bf16.gmra.mrb[0].mxu0 %v208
    %v341 = vpop.f32.mrb[0].mxu0
    %v342 = vadd.f32 0.0, %v341
    %v343 = vpop.f32.mrb[0].mxu0
    %v344 = vpop.f32.mrb[0].mxu0
    %v345 = vadd.f32 0.0, %v344
    %v346 = vpop.f32.mrb[0].mxu0
    %347 = vmatprep.mubr.bf16.mxu0 0
    %348 = vmatmul.mubr.bf16.gmra.mrb[0].mxu0 %v209
    %v349 = vpop.f32.mrb[0].mxu0
    %v350 = vadd.f32 0.0, %v349
    %v351 = vpop.f32.mrb[0].mxu0
    %v352 = vpop.f32.mrb[0].mxu0
    %v353 = vadd.f32 0.0, %v352
    %v354 = vpop.f32.mrb[0].mxu0
    %355 = vmatprep.mubr.bf16.mxu0 0
    %356 = vmatmul.mubr.bf16.gmra.mrb[0].mxu0 %v210
    %v357 = vpop.f32.mrb[0].mxu0
    %v358 = vadd.f32 0.0, %v357
    %v359 = vpop.f32.mrb[0].mxu0
    %v360 = vpop.f32.mrb[0].mxu0
    %v361 = vadd.f32 0.0, %v360
    %v362 = vpop.f32.mrb[0].mxu0
    %363 = vdwg.mxu0
    %v364 = vpack.c.bf16 %v305, %v302
    %v365 = vpack.c.bf16 %v313, %v310
    %v366 = vpack.c.bf16 %v321, %v318
    %v367 = vpack.c.bf16 %v329, %v326
    %v368 = vpack.c.bf16 %v337, %v334
    %v369 = vpack.c.bf16 %v345, %v342
    %v370 = vpack.c.bf16 %v353, %v350
    %v371 = vpack.c.bf16 %v361, %v358
    %v372 = vld [vmem:[%s4] sm:$0x1]
    %v374 = vlaneseq
    %v375 = vshrl.u32 %v374, 7
    %v376 = vsub.s32 0, %v375
    %v377 = vrot.slane %v372, %v376
    %v395 = vunpack.c.l.b16 %v123
    %v396 = vunpack.c.l.b16 %v124
    %v397 = vunpack.c.l.b16 %v125
    %v398 = vunpack.c.l.b16 %v126
    %v399 = vunpack.c.l.b16 %v127
    %v400 = vunpack.c.l.b16 %v128
    %v401 = vunpack.c.l.b16 %v129
    %v402 = vunpack.c.l.b16 %v130
    %v403 = vunpack.c.l.b16 %v131
    %v404 = vunpack.c.l.b16 %v132
    %v405 = vunpack.c.l.b16 %v133
    %v406 = vunpack.c.l.b16 %v134
    %v407 = vunpack.c.l.b16 %v135
    %v408 = vunpack.c.l.b16 %v136
    %v409 = vunpack.c.l.b16 %v137
    %v410 = vunpack.c.l.b16 %v138
    %v411 = vpack.c.b16 %v396, %v395
    %v412 = vpack.c.b16 %v398, %v397
    %v413 = vpack.c.b16 %v400, %v399
    %v414 = vpack.c.b16 %v402, %v401
    %v415 = vpack.c.b16 %v404, %v403
    %v416 = vpack.c.b16 %v406, %v405
    %v417 = vpack.c.b16 %v408, %v407
    %v418 = vpack.c.b16 %v410, %v409
    %427 = vmatprep.subr.bf16.mxu0 0
    %428 = vmatpush1.bf16.msra.mxu0 %v364
    %429 = vmatprep.subr.bf16.mxu0 0
    %430 = vmatpush1.bf16.msra.mxu0 %v365
    %431 = vmatprep.subr.bf16.mxu0 0
    %432 = vmatpush1.bf16.msra.mxu0 %v366
    %433 = vmatprep.subr.bf16.mxu0 0
    %434 = vmatpush1.bf16.msra.mxu0 %v367
    %435 = vmatprep.subr.bf16.mxu0 0
    %436 = vmatpush1.bf16.msra.mxu0 %v368
    %437 = vmatprep.subr.bf16.mxu0 0
    %438 = vmatpush1.bf16.msra.mxu0 %v369
    %439 = vmatprep.subr.bf16.mxu0 0
    %440 = vmatpush1.bf16.msra.mxu0 %v370
    %441 = vmatprep.subr.bf16.mxu0 0
    %442 = vmatpush1.bf16.msra.mxu0 %v371
    %443 = vmatprep.subr.bf16.mxu0 0
    %444 = vmatpush1.bf16.msra.mxu0 0
    %445 = vmatprep.subr.bf16.mxu0 0
    %446 = vmatpush1.bf16.msra.mxu0 0
    %447 = vmatprep.subr.bf16.mxu0 0
    %448 = vmatpush1.bf16.msra.mxu0 0
    %449 = vmatprep.subr.bf16.mxu0 0
    %450 = vmatpush1.bf16.msra.mxu0 0
    %451 = vmatprep.subr.bf16.mxu0 0
    %452 = vmatpush1.bf16.msra.mxu0 0
    %453 = vmatprep.subr.bf16.mxu0 0
    %454 = vmatpush1.bf16.msra.mxu0 0
    %455 = vmatprep.subr.bf16.mxu0 0
    %456 = vmatpush1.bf16.msra.mxu0 0
    %457 = vmatprep.subr.bf16.mxu0 0
    %458 = vmatpush1.bf16.msra.mxu0 0
    %459 = vmatprep.mubr.bf16.mxu0 0
    %460 = vmatmul.mubr.bf16.gmra.mrb[0].mxu0 %v411
    %v461 = vpop.f32.mrb[0].mxu0
    %v462 = vadd.f32 %v377, %v461
    %v463 = vpop.f32.mrb[0].mxu0
    %v464 = vpop.f32.mrb[0].mxu0
    %v465 = vadd.f32 %v377, %v464
    %v466 = vpop.f32.mrb[0].mxu0
    %467 = vmatprep.mubr.bf16.mxu0 0
    %468 = vmatmul.mubr.bf16.gmra.mrb[0].mxu0 %v412
    %v469 = vpop.f32.mrb[0].mxu0
    %v470 = vadd.f32 %v377, %v469
    %v471 = vpop.f32.mrb[0].mxu0
    %v472 = vpop.f32.mrb[0].mxu0
    %v473 = vadd.f32 %v377, %v472
    %v474 = vpop.f32.mrb[0].mxu0
    %475 = vmatprep.mubr.bf16.mxu0 0
    %476 = vmatmul.mubr.bf16.gmra.mrb[0].mxu0 %v413
    %v477 = vpop.f32.mrb[0].mxu0
    %v478 = vadd.f32 %v377, %v477
    %v479 = vpop.f32.mrb[0].mxu0
    %v480 = vpop.f32.mrb[0].mxu0
    %v481 = vadd.f32 %v377, %v480
    %v482 = vpop.f32.mrb[0].mxu0
    %483 = vmatprep.mubr.bf16.mxu0 0
    %484 = vmatmul.mubr.bf16.gmra.mrb[0].mxu0 %v414
    %v485 = vpop.f32.mrb[0].mxu0
    %v486 = vadd.f32 %v377, %v485
    %v487 = vpop.f32.mrb[0].mxu0
    %v488 = vpop.f32.mrb[0].mxu0
    %v489 = vadd.f32 %v377, %v488
    %v490 = vpop.f32.mrb[0].mxu0
    %491 = vmatprep.mubr.bf16.mxu0 0
    %492 = vmatmul.mubr.bf16.gmra.mrb[0].mxu0 %v415
    %v493 = vpop.f32.mrb[0].mxu0
    %v494 = vadd.f32 %v377, %v493
    %v495 = vpop.f32.mrb[0].mxu0
    %v496 = vpop.f32.mrb[0].mxu0
    %v497 = vadd.f32 %v377, %v496
    %v498 = vpop.f32.mrb[0].mxu0
    %499 = vmatprep.mubr.bf16.mxu0 0
    %500 = vmatmul.mubr.bf16.gmra.mrb[0].mxu0 %v416
    %v501 = vpop.f32.mrb[0].mxu0
    %v502 = vadd.f32 %v377, %v501
    %v503 = vpop.f32.mrb[0].mxu0
    %v504 = vpop.f32.mrb[0].mxu0
    %v505 = vadd.f32 %v377, %v504
    %v506 = vpop.f32.mrb[0].mxu0
    %507 = vmatprep.mubr.bf16.mxu0 0
    %508 = vmatmul.mubr.bf16.gmra.mrb[0].mxu0 %v417
    %v509 = vpop.f32.mrb[0].mxu0
    %v510 = vadd.f32 %v377, %v509
    %v511 = vpop.f32.mrb[0].mxu0
    %v512 = vpop.f32.mrb[0].mxu0
    %v513 = vadd.f32 %v377, %v512
    %v514 = vpop.f32.mrb[0].mxu0
    %515 = vmatprep.mubr.bf16.mxu0 0
    %516 = vmatmul.mubr.bf16.gmra.mrb[0].mxu0 %v418
    %v517 = vpop.f32.mrb[0].mxu0
    %v518 = vadd.f32 %v377, %v517
    %v519 = vpop.f32.mrb[0].mxu0
    %v520 = vpop.f32.mrb[0].mxu0
    %v521 = vadd.f32 %v377, %v520
    %v522 = vpop.f32.mrb[0].mxu0
    %523 = vdwg.mxu0
    %v524 = vmax.f32 %v462, 0.0
    %v525 = vmax.f32 %v465, 0.0
    %v526 = vmax.f32 %v470, 0.0
    %v527 = vmax.f32 %v473, 0.0
    %v528 = vmax.f32 %v478, 0.0
    %v529 = vmax.f32 %v481, 0.0
    %v530 = vmax.f32 %v486, 0.0
    %v531 = vmax.f32 %v489, 0.0
    %v532 = vmax.f32 %v494, 0.0
    %v533 = vmax.f32 %v497, 0.0
    %v534 = vmax.f32 %v502, 0.0
    %v535 = vmax.f32 %v505, 0.0
    %v536 = vmax.f32 %v510, 0.0
    %v537 = vmax.f32 %v513, 0.0
    %v538 = vmax.f32 %v518, 0.0
    %v539 = vmax.f32 %v521, 0.0
    %v540 = vpack.c.bf16 %v525, %v524
    %v541 = vpack.c.bf16 %v527, %v526
    %v542 = vpack.c.bf16 %v529, %v528
    %v543 = vpack.c.bf16 %v531, %v530
    %v544 = vpack.c.bf16 %v533, %v532
    %v545 = vpack.c.bf16 %v535, %v534
    %v546 = vpack.c.bf16 %v537, %v536
    %v547 = vpack.c.bf16 %v539, %v538
    %v548 = vld [vmem:[%s5] sm:$0xf]
    %v549 = vld [vmem:[%s5 + $0x4] sm:$0xf]
    %v550 = vld [vmem:[%s5 + $0x8] sm:$0xf]
    %v551 = vld [vmem:[%s5 + $0xc] sm:$0xf]
    %v552 = vld [vmem:[%s5 + $0x10] sm:$0xf]
    %v553 = vld [vmem:[%s5 + $0x14] sm:$0xf]
    %v554 = vld [vmem:[%s5 + $0x18] sm:$0xf]
    %v555 = vld [vmem:[%s5 + $0x1c] sm:$0xf]
    %v556 = vld [vmem:[%s5 + $0x20] sm:$0xf]
    %v557 = vld [vmem:[%s5 + $0x24] sm:$0xf]
    %v558 = vld [vmem:[%s5 + $0x28] sm:$0xf]
    %v559 = vld [vmem:[%s5 + $0x2c] sm:$0xf]
    %v560 = vld [vmem:[%s5 + $0x30] sm:$0xf]
    %v561 = vld [vmem:[%s5 + $0x34] sm:$0xf]
    %v562 = vld [vmem:[%s5 + $0x38] sm:$0xf]
    %v563 = vld [vmem:[%s5 + $0x3c] sm:$0xf]
    %v580 = vunpack.c.l.b16 %v548
    %v581 = vunpack.c.l.b16 %v549
    %v582 = vunpack.c.l.b16 %v550
    %v583 = vunpack.c.l.b16 %v551
    %v584 = vunpack.c.l.b16 %v552
    %v585 = vunpack.c.l.b16 %v553
    %v586 = vunpack.c.l.b16 %v554
    %v587 = vunpack.c.l.b16 %v555
    %v588 = vunpack.c.l.b16 %v556
    %v589 = vunpack.c.l.b16 %v557
    %v590 = vunpack.c.l.b16 %v558
    %v591 = vunpack.c.l.b16 %v559
    %v592 = vunpack.c.l.b16 %v560
    %v593 = vunpack.c.l.b16 %v561
    %v594 = vunpack.c.l.b16 %v562
    %v595 = vunpack.c.l.b16 %v563
    %v596 = vpack.c.b16 %v581, %v580
    %v597 = vpack.c.b16 %v583, %v582
    %v598 = vpack.c.b16 %v585, %v584
    %v599 = vpack.c.b16 %v587, %v586
    %v600 = vpack.c.b16 %v589, %v588
    %v601 = vpack.c.b16 %v591, %v590
    %v602 = vpack.c.b16 %v593, %v592
    %v603 = vpack.c.b16 %v595, %v594
    %612 = vmatprep.subr.bf16.mxu0 0
    %613 = vmatpush1.bf16.msra.mxu0 %v596
    %614 = vmatprep.subr.bf16.mxu0 0
    %615 = vmatpush1.bf16.msra.mxu0 %v597
    %616 = vmatprep.subr.bf16.mxu0 0
    %617 = vmatpush1.bf16.msra.mxu0 %v598
    %618 = vmatprep.subr.bf16.mxu0 0
    %619 = vmatpush1.bf16.msra.mxu0 %v599
    %620 = vmatprep.subr.bf16.mxu0 0
    %621 = vmatpush1.bf16.msra.mxu0 %v600
    %622 = vmatprep.subr.bf16.mxu0 0
    %623 = vmatpush1.bf16.msra.mxu0 %v601
    %624 = vmatprep.subr.bf16.mxu0 0
    %625 = vmatpush1.bf16.msra.mxu0 %v602
    %626 = vmatprep.subr.bf16.mxu0 0
    %627 = vmatpush1.bf16.msra.mxu0 %v603
    %628 = vmatprep.subr.bf16.mxu0 0
    %629 = vmatpush1.bf16.msra.mxu0 0
    %630 = vmatprep.subr.bf16.mxu0 0
    %631 = vmatpush1.bf16.msra.mxu0 0
    %632 = vmatprep.subr.bf16.mxu0 0
    %633 = vmatpush1.bf16.msra.mxu0 0
    %634 = vmatprep.subr.bf16.mxu0 0
    %635 = vmatpush1.bf16.msra.mxu0 0
    %636 = vmatprep.subr.bf16.mxu0 0
    %637 = vmatpush1.bf16.msra.mxu0 0
    %638 = vmatprep.subr.bf16.mxu0 0
    %639 = vmatpush1.bf16.msra.mxu0 0
    %640 = vmatprep.subr.bf16.mxu0 0
    %641 = vmatpush1.bf16.msra.mxu0 0
    %642 = vmatprep.subr.bf16.mxu0 0
    %643 = vmatpush1.bf16.msra.mxu0 0
    %644 = vmatprep.mubr.bf16.mxu0 0
    %645 = vmatmul.mubr.bf16.gmra.mrb[0].mxu0 %v540
    %v646 = vpop.f32.mrb[0].mxu0
    %v647 = vadd.f32 0.0, %v646
    %v648 = vpop.f32.mrb[0].mxu0
    %v649 = vpop.f32.mrb[0].mxu0
    %v650 = vadd.f32 0.0, %v649
    %v651 = vpop.f32.mrb[0].mxu0
    %652 = vmatprep.mubr.bf16.mxu0 0
    %653 = vmatmul.mubr.bf16.gmra.mrb[0].mxu0 %v541
    %v654 = vpop.f32.mrb[0].mxu0
    %v655 = vadd.f32 0.0, %v654
    %v656 = vpop.f32.mrb[0].mxu0
    %v657 = vpop.f32.mrb[0].mxu0
    %v658 = vadd.f32 0.0, %v657
    %v659 = vpop.f32.mrb[0].mxu0
    %660 = vmatprep.mubr.bf16.mxu0 0
    %661 = vmatmul.mubr.bf16.gmra.mrb[0].mxu0 %v542
    %v662 = vpop.f32.mrb[0].mxu0
    %v663 = vadd.f32 0.0, %v662
    %v664 = vpop.f32.mrb[0].mxu0
    %v665 = vpop.f32.mrb[0].mxu0
    %v666 = vadd.f32 0.0, %v665
    %v667 = vpop.f32.mrb[0].mxu0
    %668 = vmatprep.mubr.bf16.mxu0 0
    %669 = vmatmul.mubr.bf16.gmra.mrb[0].mxu0 %v543
    %v670 = vpop.f32.mrb[0].mxu0
    %v671 = vadd.f32 0.0, %v670
    %v672 = vpop.f32.mrb[0].mxu0
    %v673 = vpop.f32.mrb[0].mxu0
    %v674 = vadd.f32 0.0, %v673
    %v675 = vpop.f32.mrb[0].mxu0
    %676 = vmatprep.mubr.bf16.mxu0 0
    %677 = vmatmul.mubr.bf16.gmra.mrb[0].mxu0 %v544
    %v678 = vpop.f32.mrb[0].mxu0
    %v679 = vadd.f32 0.0, %v678
    %v680 = vpop.f32.mrb[0].mxu0
    %v681 = vpop.f32.mrb[0].mxu0
    %v682 = vadd.f32 0.0, %v681
    %v683 = vpop.f32.mrb[0].mxu0
    %684 = vmatprep.mubr.bf16.mxu0 0
    %685 = vmatmul.mubr.bf16.gmra.mrb[0].mxu0 %v545
    %v686 = vpop.f32.mrb[0].mxu0
    %v687 = vadd.f32 0.0, %v686
    %v688 = vpop.f32.mrb[0].mxu0
    %v689 = vpop.f32.mrb[0].mxu0
    %v690 = vadd.f32 0.0, %v689
    %v691 = vpop.f32.mrb[0].mxu0
    %692 = vmatprep.mubr.bf16.mxu0 0
    %693 = vmatmul.mubr.bf16.gmra.mrb[0].mxu0 %v546
    %v694 = vpop.f32.mrb[0].mxu0
    %v695 = vadd.f32 0.0, %v694
    %v696 = vpop.f32.mrb[0].mxu0
    %v697 = vpop.f32.mrb[0].mxu0
    %v698 = vadd.f32 0.0, %v697
    %v699 = vpop.f32.mrb[0].mxu0
    %700 = vmatprep.mubr.bf16.mxu0 0
    %701 = vmatmul.mubr.bf16.gmra.mrb[0].mxu0 %v547
    %v702 = vpop.f32.mrb[0].mxu0
    %v703 = vadd.f32 0.0, %v702
    %v704 = vpop.f32.mrb[0].mxu0
    %v705 = vpop.f32.mrb[0].mxu0
    %v706 = vadd.f32 0.0, %v705
    %v707 = vpop.f32.mrb[0].mxu0
    %708 = vdwg.mxu0
    %v709 = vpack.c.bf16 %v650, %v647
    %v710 = vpack.c.bf16 %v658, %v655
    %v711 = vpack.c.bf16 %v666, %v663
    %v712 = vpack.c.bf16 %v674, %v671
    %v713 = vpack.c.bf16 %v682, %v679
    %v714 = vpack.c.bf16 %v690, %v687
    %v715 = vpack.c.bf16 %v698, %v695
    %v716 = vpack.c.bf16 %v706, %v703
    %v717 = vld [vmem:[%s6] sm:$0x1]
    %v719 = vlaneseq
    %v720 = vshrl.u32 %v719, 7
    %v721 = vsub.s32 0, %v720
    %v722 = vrot.slane %v717, %v721
    %724 = vmatprep.subr.bf16.mxu0 0
    %725 = vmatpush1.bf16.msra.mxu0 %v709
    %726 = vmatprep.subr.bf16.mxu0 0
    %727 = vmatpush1.bf16.msra.mxu0 %v710
    %728 = vmatprep.subr.bf16.mxu0 0
    %729 = vmatpush1.bf16.msra.mxu0 %v711
    %730 = vmatprep.subr.bf16.mxu0 0
    %731 = vmatpush1.bf16.msra.mxu0 %v712
    %732 = vmatprep.subr.bf16.mxu0 0
    %733 = vmatpush1.bf16.msra.mxu0 %v713
    %734 = vmatprep.subr.bf16.mxu0 0
    %735 = vmatpush1.bf16.msra.mxu0 %v714
    %736 = vmatprep.subr.bf16.mxu0 0
    %737 = vmatpush1.bf16.msra.mxu0 %v715
    %738 = vmatprep.subr.bf16.mxu0 0
    %739 = vmatpush1.bf16.msra.mxu0 %v716
    %740 = vmatprep.subr.bf16.mxu0 0
    %741 = vmatpush1.bf16.msra.mxu0 0
    %742 = vmatprep.subr.bf16.mxu0 0
    %743 = vmatpush1.bf16.msra.mxu0 0
    %744 = vmatprep.subr.bf16.mxu0 0
    %745 = vmatpush1.bf16.msra.mxu0 0
    %746 = vmatprep.subr.bf16.mxu0 0
    %747 = vmatpush1.bf16.msra.mxu0 0
    %748 = vmatprep.subr.bf16.mxu0 0
    %749 = vmatpush1.bf16.msra.mxu0 0
    %750 = vmatprep.subr.bf16.mxu0 0
    %751 = vmatpush1.bf16.msra.mxu0 0
    %752 = vmatprep.subr.bf16.mxu0 0
    %753 = vmatpush1.bf16.msra.mxu0 0
    %754 = vmatprep.subr.bf16.mxu0 0
    %755 = vmatpush1.bf16.msra.mxu0 0
    %756 = vmatprep.mubr.bf16.mxu0 0
    %757 = vmatmul.mubr.bf16.gmra.mrb[0].mxu0 %v411
    %v758 = vpop.f32.mrb[0].mxu0
    %v759 = vadd.f32 %v722, %v758
    %v760 = vpop.f32.mrb[0].mxu0
    %v761 = vpop.f32.mrb[0].mxu0
    %v762 = vadd.f32 %v722, %v761
    %v763 = vpop.f32.mrb[0].mxu0
    %764 = vmatprep.mubr.bf16.mxu0 0
    %765 = vmatmul.mubr.bf16.gmra.mrb[0].mxu0 %v412
    %v766 = vpop.f32.mrb[0].mxu0
    %v767 = vadd.f32 %v722, %v766
    %v768 = vpop.f32.mrb[0].mxu0
    %v769 = vpop.f32.mrb[0].mxu0
    %v770 = vadd.f32 %v722, %v769
    %v771 = vpop.f32.mrb[0].mxu0
    %772 = vmatprep.mubr.bf16.mxu0 0
    %773 = vmatmul.mubr.bf16.gmra.mrb[0].mxu0 %v413
    %v774 = vpop.f32.mrb[0].mxu0
    %v775 = vadd.f32 %v722, %v774
    %v776 = vpop.f32.mrb[0].mxu0
    %v777 = vpop.f32.mrb[0].mxu0
    %v778 = vadd.f32 %v722, %v777
    %v779 = vpop.f32.mrb[0].mxu0
    %780 = vmatprep.mubr.bf16.mxu0 0
    %781 = vmatmul.mubr.bf16.gmra.mrb[0].mxu0 %v414
    %v782 = vpop.f32.mrb[0].mxu0
    %v783 = vadd.f32 %v722, %v782
    %v784 = vpop.f32.mrb[0].mxu0
    %v785 = vpop.f32.mrb[0].mxu0
    %v786 = vadd.f32 %v722, %v785
    %v787 = vpop.f32.mrb[0].mxu0
    %788 = vmatprep.mubr.bf16.mxu0 0
    %789 = vmatmul.mubr.bf16.gmra.mrb[0].mxu0 %v415
    %v790 = vpop.f32.mrb[0].mxu0
    %v791 = vadd.f32 %v722, %v790
    %v792 = vpop.f32.mrb[0].mxu0
    %v793 = vpop.f32.mrb[0].mxu0
    %v794 = vadd.f32 %v722, %v793
    %v795 = vpop.f32.mrb[0].mxu0
    %796 = vmatprep.mubr.bf16.mxu0 0
    %797 = vmatmul.mubr.bf16.gmra.mrb[0].mxu0 %v416
    %v798 = vpop.f32.mrb[0].mxu0
    %v799 = vadd.f32 %v722, %v798
    %v800 = vpop.f32.mrb[0].mxu0
    %v801 = vpop.f32.mrb[0].mxu0
    %v802 = vadd.f32 %v722, %v801
    %v803 = vpop.f32.mrb[0].mxu0
    %804 = vmatprep.mubr.bf16.mxu0 0
    %805 = vmatmul.mubr.bf16.gmra.mrb[0].mxu0 %v417
    %v806 = vpop.f32.mrb[0].mxu0
    %v807 = vadd.f32 %v722, %v806
    %v808 = vpop.f32.mrb[0].mxu0
    %v809 = vpop.f32.mrb[0].mxu0
    %v810 = vadd.f32 %v722, %v809
    %v811 = vpop.f32.mrb[0].mxu0
    %812 = vmatprep.mubr.bf16.mxu0 0
    %813 = vmatmul.mubr.bf16.gmra.mrb[0].mxu0 %v418
    %v814 = vpop.f32.mrb[0].mxu0
    %v815 = vadd.f32 %v722, %v814
    %v816 = vpop.f32.mrb[0].mxu0
    %v817 = vpop.f32.mrb[0].mxu0
    %v818 = vadd.f32 %v722, %v817
    %v819 = vpop.f32.mrb[0].mxu0
    %820 = vdwg.mxu0
    %v821 = vmax.f32 %v759, 0.0
    %v822 = vmax.f32 %v762, 0.0
    %v823 = vmax.f32 %v767, 0.0
    %v824 = vmax.f32 %v770, 0.0
    %v825 = vmax.f32 %v775, 0.0
    %v826 = vmax.f32 %v778, 0.0
    %v827 = vmax.f32 %v783, 0.0
    %v828 = vmax.f32 %v786, 0.0
    %v829 = vmax.f32 %v791, 0.0
    %v830 = vmax.f32 %v794, 0.0
    %v831 = vmax.f32 %v799, 0.0
    %v832 = vmax.f32 %v802, 0.0
    %v833 = vmax.f32 %v807, 0.0
    %v834 = vmax.f32 %v810, 0.0
    %v835 = vmax.f32 %v815, 0.0
    %v836 = vmax.f32 %v818, 0.0
    %v837 = vpack.c.bf16 %v822, %v821
    %v838 = vpack.c.bf16 %v824, %v823
    %v839 = vpack.c.bf16 %v826, %v825
    %v840 = vpack.c.bf16 %v828, %v827
    %v841 = vpack.c.bf16 %v830, %v829
    %v842 = vpack.c.bf16 %v832, %v831
    %v843 = vpack.c.bf16 %v834, %v833
    %v844 = vpack.c.bf16 %v836, %v835
    %v845 = vld [vmem:[#allocation4] sm:$0xf]
    %v846 = vld [vmem:[#allocation4 + $0x4] sm:$0xf]
    %v847 = vld [vmem:[#allocation4 + $0x8] sm:$0xf]
    %v848 = vld [vmem:[#allocation4 + $0xc] sm:$0xf]
    %v849 = vld [vmem:[#allocation4 + $0x10] sm:$0xf]
    %v850 = vld [vmem:[#allocation4 + $0x14] sm:$0xf]
    %v851 = vld [vmem:[#allocation4 + $0x18] sm:$0xf]
    %v852 = vld [vmem:[#allocation4 + $0x1c] sm:$0xf]
    %v853 = vld [vmem:[#allocation4 + $0x20] sm:$0xf]
    %v854 = vld [vmem:[#allocation4 + $0x24] sm:$0xf]
    %v855 = vld [vmem:[#allocation4 + $0x28] sm:$0xf]
    %v856 = vld [vmem:[#allocation4 + $0x2c] sm:$0xf]
    %v857 = vld [vmem:[#allocation4 + $0x30] sm:$0xf]
    %v858 = vld [vmem:[#allocation4 + $0x34] sm:$0xf]
    %v859 = vld [vmem:[#allocation4 + $0x38] sm:$0xf]
    %v860 = vld [vmem:[#allocation4 + $0x3c] sm:$0xf]
    %v877 = vunpack.c.l.b16 %v845
    %v878 = vunpack.c.l.b16 %v846
    %v879 = vunpack.c.l.b16 %v847
    %v880 = vunpack.c.l.b16 %v848
    %v881 = vunpack.c.l.b16 %v849
    %v882 = vunpack.c.l.b16 %v850
    %v883 = vunpack.c.l.b16 %v851
    %v884 = vunpack.c.l.b16 %v852
    %v885 = vunpack.c.l.b16 %v853
    %v886 = vunpack.c.l.b16 %v854
    %v887 = vunpack.c.l.b16 %v855
    %v888 = vunpack.c.l.b16 %v856
    %v889 = vunpack.c.l.b16 %v857
    %v890 = vunpack.c.l.b16 %v858
    %v891 = vunpack.c.l.b16 %v859
    %v892 = vunpack.c.l.b16 %v860
    %v893 = vpack.c.b16 %v878, %v877
    %v894 = vpack.c.b16 %v880, %v879
    %v895 = vpack.c.b16 %v882, %v881
    %v896 = vpack.c.b16 %v884, %v883
    %v897 = vpack.c.b16 %v886, %v885
    %v898 = vpack.c.b16 %v888, %v887
    %v899 = vpack.c.b16 %v890, %v889
    %v900 = vpack.c.b16 %v892, %v891
    %909 = vmatprep.subr.bf16.mxu0 0
    %910 = vmatpush1.bf16.msra.mxu0 %v893
    %911 = vmatprep.subr.bf16.mxu0 0
    %912 = vmatpush1.bf16.msra.mxu0 %v894
    %913 = vmatprep.subr.bf16.mxu0 0
    %914 = vmatpush1.bf16.msra.mxu0 %v895
    %915 = vmatprep.subr.bf16.mxu0 0
    %916 = vmatpush1.bf16.msra.mxu0 %v896
    %917 = vmatprep.subr.bf16.mxu0 0
    %918 = vmatpush1.bf16.msra.mxu0 %v897
    %919 = vmatprep.subr.bf16.mxu0 0
    %920 = vmatpush1.bf16.msra.mxu0 %v898
    %921 = vmatprep.subr.bf16.mxu0 0
    %922 = vmatpush1.bf16.msra.mxu0 %v899
    %923 = vmatprep.subr.bf16.mxu0 0
    %924 = vmatpush1.bf16.msra.mxu0 %v900
    %925 = vmatprep.subr.bf16.mxu0 0
    %926 = vmatpush1.bf16.msra.mxu0 0
    %927 = vmatprep.subr.bf16.mxu0 0
    %928 = vmatpush1.bf16.msra.mxu0 0
    %929 = vmatprep.subr.bf16.mxu0 0
    %930 = vmatpush1.bf16.msra.mxu0 0
    %931 = vmatprep.subr.bf16.mxu0 0
    %932 = vmatpush1.bf16.msra.mxu0 0
    %933 = vmatprep.subr.bf16.mxu0 0
    %934 = vmatpush1.bf16.msra.mxu0 0
    %935 = vmatprep.subr.bf16.mxu0 0
    %936 = vmatpush1.bf16.msra.mxu0 0
    %937 = vmatprep.subr.bf16.mxu0 0
    %938 = vmatpush1.bf16.msra.mxu0 0
    %939 = vmatprep.subr.bf16.mxu0 0
    %940 = vmatpush1.bf16.msra.mxu0 0
    %941 = vmatprep.mubr.bf16.mxu0 0
    %942 = vmatmul.mubr.bf16.gmra.mrb[0].mxu0 %v837
    %v943 = vpop.f32.mrb[0].mxu0
    %v944 = vadd.f32 0.0, %v943
    %v945 = vpop.f32.mrb[0].mxu0
    %v946 = vpop.f32.mrb[0].mxu0
    %v947 = vadd.f32 0.0, %v946
    %v948 = vpop.f32.mrb[0].mxu0
    %949 = vmatprep.mubr.bf16.mxu0 0
    %950 = vmatmul.mubr.bf16.gmra.mrb[0].mxu0 %v838
    %v951 = vpop.f32.mrb[0].mxu0
    %v952 = vadd.f32 0.0, %v951
    %v953 = vpop.f32.mrb[0].mxu0
    %v954 = vpop.f32.mrb[0].mxu0
    %v955 = vadd.f32 0.0, %v954
    %v956 = vpop.f32.mrb[0].mxu0
    %957 = vmatprep.mubr.bf16.mxu0 0
    %958 = vmatmul.mubr.bf16.gmra.mrb[0].mxu0 %v839
    %v959 = vpop.f32.mrb[0].mxu0
    %v960 = vadd.f32 0.0, %v959
    %v961 = vpop.f32.mrb[0].mxu0
    %v962 = vpop.f32.mrb[0].mxu0
    %v963 = vadd.f32 0.0, %v962
    %v964 = vpop.f32.mrb[0].mxu0
    %965 = vmatprep.mubr.bf16.mxu0 0
    %966 = vmatmul.mubr.bf16.gmra.mrb[0].mxu0 %v840
    %v967 = vpop.f32.mrb[0].mxu0
    %v968 = vadd.f32 0.0, %v967
    %v969 = vpop.f32.mrb[0].mxu0
    %v970 = vpop.f32.mrb[0].mxu0
    %v971 = vadd.f32 0.0, %v970
    %v972 = vpop.f32.mrb[0].mxu0
    %973 = vmatprep.mubr.bf16.mxu0 0
    %974 = vmatmul.mubr.bf16.gmra.mrb[0].mxu0 %v841
    %v975 = vpop.f32.mrb[0].mxu0
    %v976 = vadd.f32 0.0, %v975
    %v977 = vpop.f32.mrb[0].mxu0
    %v978 = vpop.f32.mrb[0].mxu0
    %v979 = vadd.f32 0.0, %v978
    %v980 = vpop.f32.mrb[0].mxu0
    %981 = vmatprep.mubr.bf16.mxu0 0
    %982 = vmatmul.mubr.bf16.gmra.mrb[0].mxu0 %v842
    %v983 = vpop.f32.mrb[0].mxu0
    %v984 = vadd.f32 0.0, %v983
    %v985 = vpop.f32.mrb[0].mxu0
    %v986 = vpop.f32.mrb[0].mxu0
    %v987 = vadd.f32 0.0, %v986
    %v988 = vpop.f32.mrb[0].mxu0
    %989 = vmatprep.mubr.bf16.mxu0 0
    %990 = vmatmul.mubr.bf16.gmra.mrb[0].mxu0 %v843
    %v991 = vpop.f32.mrb[0].mxu0
    %v992 = vadd.f32 0.0, %v991
    %v993 = vpop.f32.mrb[0].mxu0
    %v994 = vpop.f32.mrb[0].mxu0
    %v995 = vadd.f32 0.0, %v994
    %v996 = vpop.f32.mrb[0].mxu0
    %997 = vmatprep.mubr.bf16.mxu0 0
    %998 = vmatmul.mubr.bf16.gmra.mrb[0].mxu0 %v844
    %v999 = vpop.f32.mrb[0].mxu0
    %v1000 = vadd.f32 0.0, %v999
    %v1001 = vpop.f32.mrb[0].mxu0
    %v1002 = vpop.f32.mrb[0].mxu0
    %v1003 = vadd.f32 0.0, %v1002
    %v1004 = vpop.f32.mrb[0].mxu0
    %1005 = vdwg.mxu0
    %v1006 = vpack.c.bf16 %v947, %v944
    %v1007 = vpack.c.bf16 %v955, %v952
    %v1008 = vpack.c.bf16 %v963, %v960
    %v1009 = vpack.c.bf16 %v971, %v968
    %v1010 = vpack.c.bf16 %v979, %v976
    %v1011 = vpack.c.bf16 %v987, %v984
    %v1012 = vpack.c.bf16 %v995, %v992
    %v1013 = vpack.c.bf16 %v1003, %v1000
    %v1014 = vld [vmem:[%s8] sm:$0x1]
    %v1016 = vlaneseq
    %v1017 = vshrl.u32 %v1016, 7
    %v1018 = vsub.s32 0, %v1017
    %v1019 = vrot.slane %v1014, %v1018
    %1021 = vmatprep.subr.bf16.mxu0 0
    %1022 = vmatpush1.bf16.msra.mxu0 %v1006
    %1023 = vmatprep.subr.bf16.mxu0 0
    %1024 = vmatpush1.bf16.msra.mxu0 %v1007
    %1025 = vmatprep.subr.bf16.mxu0 0
    %1026 = vmatpush1.bf16.msra.mxu0 %v1008
    %1027 = vmatprep.subr.bf16.mxu0 0
    %1028 = vmatpush1.bf16.msra.mxu0 %v1009
    %1029 = vmatprep.subr.bf16.mxu0 0
    %1030 = vmatpush1.bf16.msra.mxu0 %v1010
    %1031 = vmatprep.subr.bf16.mxu0 0
    %1032 = vmatpush1.bf16.msra.mxu0 %v1011
    %1033 = vmatprep.subr.bf16.mxu0 0
    %1034 = vmatpush1.bf16.msra.mxu0 %v1012
    %1035 = vmatprep.subr.bf16.mxu0 0
    %1036 = vmatpush1.bf16.msra.mxu0 %v1013
    %1037 = vmatprep.subr.bf16.mxu0 0
    %1038 = vmatpush1.bf16.msra.mxu0 0
    %1039 = vmatprep.subr.bf16.mxu0 0
    %1040 = vmatpush1.bf16.msra.mxu0 0
    %1041 = vmatprep.subr.bf16.mxu0 0
    %1042 = vmatpush1.bf16.msra.mxu0 0
    %1043 = vmatprep.subr.bf16.mxu0 0
    %1044 = vmatpush1.bf16.msra.mxu0 0
    %1045 = vmatprep.subr.bf16.mxu0 0
    %1046 = vmatpush1.bf16.msra.mxu0 0
    %1047 = vmatprep.subr.bf16.mxu0 0
    %1048 = vmatpush1.bf16.msra.mxu0 0
    %1049 = vmatprep.subr.bf16.mxu0 0
    %1050 = vmatpush1.bf16.msra.mxu0 0
    %1051 = vmatprep.subr.bf16.mxu0 0
    %1052 = vmatpush1.bf16.msra.mxu0 0
    %1053 = vmatprep.mubr.bf16.mxu0 0
    %1054 = vmatmul.mubr.bf16.gmra.mrb[0].mxu0 %v411
    %v1055 = vpop.f32.mrb[0].mxu0
    %v1056 = vadd.f32 %v1019, %v1055
    %v1057 = vpop.f32.mrb[0].mxu0
    %v1058 = vpop.f32.mrb[0].mxu0
    %v1059 = vadd.f32 %v1019, %v1058
    %v1060 = vpop.f32.mrb[0].mxu0
    %1061 = vmatprep.mubr.bf16.mxu0 0
    %1062 = vmatmul.mubr.bf16.gmra.mrb[0].mxu0 %v412
    %v1063 = vpop.f32.mrb[0].mxu0
    %v1064 = vadd.f32 %v1019, %v1063
    %v1065 = vpop.f32.mrb[0].mxu0
    %v1066 = vpop.f32.mrb[0].mxu0
    %v1067 = vadd.f32 %v1019, %v1066
    %v1068 = vpop.f32.mrb[0].mxu0
    %1069 = vmatprep.mubr.bf16.mxu0 0
    %1070 = vmatmul.mubr.bf16.gmra.mrb[0].mxu0 %v413
    %v1071 = vpop.f32.mrb[0].mxu0
    %v1072 = vadd.f32 %v1019, %v1071
    %v1073 = vpop.f32.mrb[0].mxu0
    %v1074 = vpop.f32.mrb[0].mxu0
    %v1075 = vadd.f32 %v1019, %v1074
    %v1076 = vpop.f32.mrb[0].mxu0
    %1077 = vmatprep.mubr.bf16.mxu0 0
    %1078 = vmatmul.mubr.bf16.gmra.mrb[0].mxu0 %v414
    %v1079 = vpop.f32.mrb[0].mxu0
    %v1080 = vadd.f32 %v1019, %v1079
    %v1081 = vpop.f32.mrb[0].mxu0
    %v1082 = vpop.f32.mrb[0].mxu0
    %v1083 = vadd.f32 %v1019, %v1082
    %v1084 = vpop.f32.mrb[0].mxu0
    %1085 = vmatprep.mubr.bf16.mxu0 0
    %1086 = vmatmul.mubr.bf16.gmra.mrb[0].mxu0 %v415
    %v1087 = vpop.f32.mrb[0].mxu0
    %v1088 = vadd.f32 %v1019, %v1087
    %v1089 = vpop.f32.mrb[0].mxu0
    %v1090 = vpop.f32.mrb[0].mxu0
    %v1091 = vadd.f32 %v1019, %v1090
    %v1092 = vpop.f32.mrb[0].mxu0
    %1093 = vmatprep.mubr.bf16.mxu0 0
    %1094 = vmatmul.mubr.bf16.gmra.mrb[0].mxu0 %v416
    %v1095 = vpop.f32.mrb[0].mxu0
    %v1096 = vadd.f32 %v1019, %v1095
    %v1097 = vpop.f32.mrb[0].mxu0
    %v1098 = vpop.f32.mrb[0].mxu0
    %v1099 = vadd.f32 %v1019, %v1098
    %v1100 = vpop.f32.mrb[0].mxu0
    %1101 = vmatprep.mubr.bf16.mxu0 0
    %1102 = vmatmul.mubr.bf16.gmra.mrb[0].mxu0 %v417
    %v1103 = vpop.f32.mrb[0].mxu0
    %v1104 = vadd.f32 %v1019, %v1103
    %v1105 = vpop.f32.mrb[0].mxu0
    %v1106 = vpop.f32.mrb[0].mxu0
    %v1107 = vadd.f32 %v1019, %v1106
    %v1108 = vpop.f32.mrb[0].mxu0
    %1109 = vmatprep.mubr.bf16.mxu0 0
    %1110 = vmatmul.mubr.bf16.gmra.mrb[0].mxu0 %v418
    %v1111 = vpop.f32.mrb[0].mxu0
    %v1112 = vadd.f32 %v1019, %v1111
    %v1113 = vpop.f32.mrb[0].mxu0
    %v1114 = vpop.f32.mrb[0].mxu0
    %v1115 = vadd.f32 %v1019, %v1114
    %v1116 = vpop.f32.mrb[0].mxu0
    %1117 = vdwg.mxu0
    %v1118 = vmax.f32 %v1056, 0.0
    %v1119 = vmax.f32 %v1059, 0.0
    %v1120 = vmax.f32 %v1064, 0.0
    %v1121 = vmax.f32 %v1067, 0.0
    %v1122 = vmax.f32 %v1072, 0.0
    %v1123 = vmax.f32 %v1075, 0.0
    %v1124 = vmax.f32 %v1080, 0.0
    %v1125 = vmax.f32 %v1083, 0.0
    %v1126 = vmax.f32 %v1088, 0.0
    %v1127 = vmax.f32 %v1091, 0.0
    %v1128 = vmax.f32 %v1096, 0.0
    %v1129 = vmax.f32 %v1099, 0.0
    %v1130 = vmax.f32 %v1104, 0.0
    %v1131 = vmax.f32 %v1107, 0.0
    %v1132 = vmax.f32 %v1112, 0.0
    %v1133 = vmax.f32 %v1115, 0.0
    %v1134 = vpack.c.bf16 %v1119, %v1118
    %v1135 = vpack.c.bf16 %v1121, %v1120
    %v1136 = vpack.c.bf16 %v1123, %v1122
    %v1137 = vpack.c.bf16 %v1125, %v1124
    %v1138 = vpack.c.bf16 %v1127, %v1126
    %v1139 = vpack.c.bf16 %v1129, %v1128
    %v1140 = vpack.c.bf16 %v1131, %v1130
    %v1141 = vpack.c.bf16 %v1133, %v1132
    %v1142 = vld [vmem:[%s9] sm:$0xf]
    %v1143 = vld [vmem:[%s9 + $0x4] sm:$0xf]
    %v1144 = vld [vmem:[%s9 + $0x8] sm:$0xf]
    %v1145 = vld [vmem:[%s9 + $0xc] sm:$0xf]
    %v1146 = vld [vmem:[%s9 + $0x10] sm:$0xf]
    %v1147 = vld [vmem:[%s9 + $0x14] sm:$0xf]
    %v1148 = vld [vmem:[%s9 + $0x18] sm:$0xf]
    %v1149 = vld [vmem:[%s9 + $0x1c] sm:$0xf]
    %v1150 = vld [vmem:[%s9 + $0x20] sm:$0xf]
    %v1151 = vld [vmem:[%s9 + $0x24] sm:$0xf]
    %v1152 = vld [vmem:[%s9 + $0x28] sm:$0xf]
    %v1153 = vld [vmem:[%s9 + $0x2c] sm:$0xf]
    %v1154 = vld [vmem:[%s9 + $0x30] sm:$0xf]
    %v1155 = vld [vmem:[%s9 + $0x34] sm:$0xf]
    %v1156 = vld [vmem:[%s9 + $0x38] sm:$0xf]
    %v1157 = vld [vmem:[%s9 + $0x3c] sm:$0xf]
    %v1174 = vunpack.c.l.b16 %v1142
    %v1175 = vunpack.c.l.b16 %v1143
    %v1176 = vunpack.c.l.b16 %v1144
    %v1177 = vunpack.c.l.b16 %v1145
    %v1178 = vunpack.c.l.b16 %v1146
    %v1179 = vunpack.c.l.b16 %v1147
    %v1180 = vunpack.c.l.b16 %v1148
    %v1181 = vunpack.c.l.b16 %v1149
    %v1182 = vunpack.c.l.b16 %v1150
    %v1183 = vunpack.c.l.b16 %v1151
    %v1184 = vunpack.c.l.b16 %v1152
    %v1185 = vunpack.c.l.b16 %v1153
    %v1186 = vunpack.c.l.b16 %v1154
    %v1187 = vunpack.c.l.b16 %v1155
    %v1188 = vunpack.c.l.b16 %v1156
    %v1189 = vunpack.c.l.b16 %v1157
    %v1190 = vpack.c.b16 %v1175, %v1174
    %v1191 = vpack.c.b16 %v1177, %v1176
    %v1192 = vpack.c.b16 %v1179, %v1178
    %v1193 = vpack.c.b16 %v1181, %v1180
    %v1194 = vpack.c.b16 %v1183, %v1182
    %v1195 = vpack.c.b16 %v1185, %v1184
    %v1196 = vpack.c.b16 %v1187, %v1186
    %v1197 = vpack.c.b16 %v1189, %v1188
    %1206 = vmatprep.subr.bf16.mxu0 0
    %1207 = vmatpush1.bf16.msra.mxu0 %v1190
    %1208 = vmatprep.subr.bf16.mxu0 0
    %1209 = vmatpush1.bf16.msra.mxu0 %v1191
    %1210 = vmatprep.subr.bf16.mxu0 0
    %1211 = vmatpush1.bf16.msra.mxu0 %v1192
    %1212 = vmatprep.subr.bf16.mxu0 0
    %1213 = vmatpush1.bf16.msra.mxu0 %v1193
    %1214 = vmatprep.subr.bf16.mxu0 0
    %1215 = vmatpush1.bf16.msra.mxu0 %v1194
    %1216 = vmatprep.subr.bf16.mxu0 0
    %1217 = vmatpush1.bf16.msra.mxu0 %v1195
    %1218 = vmatprep.subr.bf16.mxu0 0
    %1219 = vmatpush1.bf16.msra.mxu0 %v1196
    %1220 = vmatprep.subr.bf16.mxu0 0
    %1221 = vmatpush1.bf16.msra.mxu0 %v1197
    %1222 = vmatprep.subr.bf16.mxu0 0
    %1223 = vmatpush1.bf16.msra.mxu0 0
    %1224 = vmatprep.subr.bf16.mxu0 0
    %1225 = vmatpush1.bf16.msra.mxu0 0
    %1226 = vmatprep.subr.bf16.mxu0 0
    %1227 = vmatpush1.bf16.msra.mxu0 0
    %1228 = vmatprep.subr.bf16.mxu0 0
    %1229 = vmatpush1.bf16.msra.mxu0 0
    %1230 = vmatprep.subr.bf16.mxu0 0
    %1231 = vmatpush1.bf16.msra.mxu0 0
    %1232 = vmatprep.subr.bf16.mxu0 0
    %1233 = vmatpush1.bf16.msra.mxu0 0
    %1234 = vmatprep.subr.bf16.mxu0 0
    %1235 = vmatpush1.bf16.msra.mxu0 0
    %1236 = vmatprep.subr.bf16.mxu0 0
    %1237 = vmatpush1.bf16.msra.mxu0 0
    %1238 = vmatprep.mubr.bf16.mxu0 0
    %1239 = vmatmul.mubr.bf16.gmra.mrb[0].mxu0 %v1134
    %v1240 = vpop.f32.mrb[0].mxu0
    %v1241 = vadd.f32 0.0, %v1240
    %v1242 = vpop.f32.mrb[0].mxu0
    %v1243 = vpop.f32.mrb[0].mxu0
    %v1244 = vadd.f32 0.0, %v1243
    %v1245 = vpop.f32.mrb[0].mxu0
    %1246 = vmatprep.mubr.bf16.mxu0 0
    %1247 = vmatmul.mubr.bf16.gmra.mrb[0].mxu0 %v1135
    %v1248 = vpop.f32.mrb[0].mxu0
    %v1249 = vadd.f32 0.0, %v1248
    %v1250 = vpop.f32.mrb[0].mxu0
    %v1251 = vpop.f32.mrb[0].mxu0
    %v1252 = vadd.f32 0.0, %v1251
    %v1253 = vpop.f32.mrb[0].mxu0
    %1254 = vmatprep.mubr.bf16.mxu0 0
    %1255 = vmatmul.mubr.bf16.gmra.mrb[0].mxu0 %v1136
    %v1256 = vpop.f32.mrb[0].mxu0
    %v1257 = vadd.f32 0.0, %v1256
    %v1258 = vpop.f32.mrb[0].mxu0
    %v1259 = vpop.f32.mrb[0].mxu0
    %v1260 = vadd.f32 0.0, %v1259
    %v1261 = vpop.f32.mrb[0].mxu0
    %1262 = vmatprep.mubr.bf16.mxu0 0
    %1263 = vmatmul.mubr.bf16.gmra.mrb[0].mxu0 %v1137
    %v1264 = vpop.f32.mrb[0].mxu0
    %v1265 = vadd.f32 0.0, %v1264
    %v1266 = vpop.f32.mrb[0].mxu0
    %v1267 = vpop.f32.mrb[0].mxu0
    %v1268 = vadd.f32 0.0, %v1267
    %v1269 = vpop.f32.mrb[0].mxu0
    %1270 = vmatprep.mubr.bf16.mxu0 0
    %1271 = vmatmul.mubr.bf16.gmra.mrb[0].mxu0 %v1138
    %v1272 = vpop.f32.mrb[0].mxu0
    %v1273 = vadd.f32 0.0, %v1272
    %v1274 = vpop.f32.mrb[0].mxu0
    %v1275 = vpop.f32.mrb[0].mxu0
    %v1276 = vadd.f32 0.0, %v1275
    %v1277 = vpop.f32.mrb[0].mxu0
    %1278 = vmatprep.mubr.bf16.mxu0 0
    %1279 = vmatmul.mubr.bf16.gmra.mrb[0].mxu0 %v1139
    %v1280 = vpop.f32.mrb[0].mxu0
    %v1281 = vadd.f32 0.0, %v1280
    %v1282 = vpop.f32.mrb[0].mxu0
    %v1283 = vpop.f32.mrb[0].mxu0
    %v1284 = vadd.f32 0.0, %v1283
    %v1285 = vpop.f32.mrb[0].mxu0
    %1286 = vmatprep.mubr.bf16.mxu0 0
    %1287 = vmatmul.mubr.bf16.gmra.mrb[0].mxu0 %v1140
    %v1288 = vpop.f32.mrb[0].mxu0
    %v1289 = vadd.f32 0.0, %v1288
    %v1290 = vpop.f32.mrb[0].mxu0
    %v1291 = vpop.f32.mrb[0].mxu0
    %v1292 = vadd.f32 0.0, %v1291
    %v1293 = vpop.f32.mrb[0].mxu0
    %1294 = vmatprep.mubr.bf16.mxu0 0
    %1295 = vmatmul.mubr.bf16.gmra.mrb[0].mxu0 %v1141
    %v1296 = vpop.f32.mrb[0].mxu0
    %v1297 = vadd.f32 0.0, %v1296
    %v1298 = vpop.f32.mrb[0].mxu0
    %v1299 = vpop.f32.mrb[0].mxu0
    %v1300 = vadd.f32 0.0, %v1299
    %v1301 = vpop.f32.mrb[0].mxu0
    %1302 = vdwg.mxu0
    %v1303 = vpack.c.bf16 %v1244, %v1241
    %v1304 = vpack.c.bf16 %v1252, %v1249
    %v1305 = vpack.c.bf16 %v1260, %v1257
    %v1306 = vpack.c.bf16 %v1268, %v1265
    %v1307 = vpack.c.bf16 %v1276, %v1273
    %v1308 = vpack.c.bf16 %v1284, %v1281
    %v1309 = vpack.c.bf16 %v1292, %v1289
    %v1310 = vpack.c.bf16 %v1300, %v1297
    %v1311 = vld [vmem:[%s10] sm:$0x1]
    %v1313 = vlaneseq
    %v1314 = vshrl.u32 %v1313, 7
    %v1315 = vsub.s32 0, %v1314
    %v1316 = vrot.slane %v1311, %v1315
    %1318 = vmatprep.subr.bf16.mxu0 0
    %1319 = vmatpush1.bf16.msra.mxu0 %v1303
    %1320 = vmatprep.subr.bf16.mxu0 0
    %1321 = vmatpush1.bf16.msra.mxu0 %v1304
    %1322 = vmatprep.subr.bf16.mxu0 0
    %1323 = vmatpush1.bf16.msra.mxu0 %v1305
    %1324 = vmatprep.subr.bf16.mxu0 0
    %1325 = vmatpush1.bf16.msra.mxu0 %v1306
    %1326 = vmatprep.subr.bf16.mxu0 0
    %1327 = vmatpush1.bf16.msra.mxu0 %v1307
    %1328 = vmatprep.subr.bf16.mxu0 0
    %1329 = vmatpush1.bf16.msra.mxu0 %v1308
    %1330 = vmatprep.subr.bf16.mxu0 0
    %1331 = vmatpush1.bf16.msra.mxu0 %v1309
    %1332 = vmatprep.subr.bf16.mxu0 0
    %1333 = vmatpush1.bf16.msra.mxu0 %v1310
    %1334 = vmatprep.subr.bf16.mxu0 0
    %1335 = vmatpush1.bf16.msra.mxu0 0
    %1336 = vmatprep.subr.bf16.mxu0 0
    %1337 = vmatpush1.bf16.msra.mxu0 0
    %1338 = vmatprep.subr.bf16.mxu0 0
    %1339 = vmatpush1.bf16.msra.mxu0 0
    %1340 = vmatprep.subr.bf16.mxu0 0
    %1341 = vmatpush1.bf16.msra.mxu0 0
    %1342 = vmatprep.subr.bf16.mxu0 0
    %1343 = vmatpush1.bf16.msra.mxu0 0
    %1344 = vmatprep.subr.bf16.mxu0 0
    %1345 = vmatpush1.bf16.msra.mxu0 0
    %1346 = vmatprep.subr.bf16.mxu0 0
    %1347 = vmatpush1.bf16.msra.mxu0 0
    %1348 = vmatprep.subr.bf16.mxu0 0
    %1349 = vmatpush1.bf16.msra.mxu0 0
    %1350 = vmatprep.mubr.bf16.mxu0 0
    %1351 = vmatmul.mubr.bf16.gmra.mrb[0].mxu0 %v411
    %v1352 = vpop.f32.mrb[0].mxu0
    %v1353 = vadd.f32 %v1316, %v1352
    %v1354 = vpop.f32.mrb[0].mxu0
    %v1355 = vpop.f32.mrb[0].mxu0
    %v1356 = vadd.f32 %v1316, %v1355
    %v1357 = vpop.f32.mrb[0].mxu0
    %1358 = vmatprep.mubr.bf16.mxu0 0
    %1359 = vmatmul.mubr.bf16.gmra.mrb[0].mxu0 %v412
    %v1360 = vpop.f32.mrb[0].mxu0
    %v1361 = vadd.f32 %v1316, %v1360
    %v1362 = vpop.f32.mrb[0].mxu0
    %v1363 = vpop.f32.mrb[0].mxu0
    %v1364 = vadd.f32 %v1316, %v1363
    %v1365 = vpop.f32.mrb[0].mxu0
    %1366 = vmatprep.mubr.bf16.mxu0 0
    %1367 = vmatmul.mubr.bf16.gmra.mrb[0].mxu0 %v413
    %v1368 = vpop.f32.mrb[0].mxu0
    %v1369 = vadd.f32 %v1316, %v1368
    %v1370 = vpop.f32.mrb[0].mxu0
    %v1371 = vpop.f32.mrb[0].mxu0
    %v1372 = vadd.f32 %v1316, %v1371
    %v1373 = vpop.f32.mrb[0].mxu0
    %1374 = vmatprep.mubr.bf16.mxu0 0
    %1375 = vmatmul.mubr.bf16.gmra.mrb[0].mxu0 %v414
    %v1376 = vpop.f32.mrb[0].mxu0
    %v1377 = vadd.f32 %v1316, %v1376
    %v1378 = vpop.f32.mrb[0].mxu0
    %v1379 = vpop.f32.mrb[0].mxu0
    %v1380 = vadd.f32 %v1316, %v1379
    %v1381 = vpop.f32.mrb[0].mxu0
    %1382 = vmatprep.mubr.bf16.mxu0 0
    %1383 = vmatmul.mubr.bf16.gmra.mrb[0].mxu0 %v415
    %v1384 = vpop.f32.mrb[0].mxu0
    %v1385 = vadd.f32 %v1316, %v1384
    %v1386 = vpop.f32.mrb[0].mxu0
    %v1387 = vpop.f32.mrb[0].mxu0
    %v1388 = vadd.f32 %v1316, %v1387
    %v1389 = vpop.f32.mrb[0].mxu0
    %1390 = vmatprep.mubr.bf16.mxu0 0
    %1391 = vmatmul.mubr.bf16.gmra.mrb[0].mxu0 %v416
    %v1392 = vpop.f32.mrb[0].mxu0
    %v1393 = vadd.f32 %v1316, %v1392
    %v1394 = vpop.f32.mrb[0].mxu0
    %v1395 = vpop.f32.mrb[0].mxu0
    %v1396 = vadd.f32 %v1316, %v1395
    %v1397 = vpop.f32.mrb[0].mxu0
    %1398 = vmatprep.mubr.bf16.mxu0 0
    %1399 = vmatmul.mubr.bf16.gmra.mrb[0].mxu0 %v417
    %v1400 = vpop.f32.mrb[0].mxu0
    %v1401 = vadd.f32 %v1316, %v1400
    %v1402 = vpop.f32.mrb[0].mxu0
    %v1403 = vpop.f32.mrb[0].mxu0
    %v1404 = vadd.f32 %v1316, %v1403
    %v1405 = vpop.f32.mrb[0].mxu0
    %1406 = vmatprep.mubr.bf16.mxu0 0
    %1407 = vmatmul.mubr.bf16.gmra.mrb[0].mxu0 %v418
    %v1408 = vpop.f32.mrb[0].mxu0
    %v1409 = vadd.f32 %v1316, %v1408
    %v1410 = vpop.f32.mrb[0].mxu0
    %v1411 = vpop.f32.mrb[0].mxu0
    %v1412 = vadd.f32 %v1316, %v1411
    %v1413 = vpop.f32.mrb[0].mxu0
    %1414 = vdwg.mxu0
    %v1415 = vmax.f32 %v1353, 0.0
    %v1416 = vmax.f32 %v1356, 0.0
    %v1417 = vmax.f32 %v1361, 0.0
    %v1418 = vmax.f32 %v1364, 0.0
    %v1419 = vmax.f32 %v1369, 0.0
    %v1420 = vmax.f32 %v1372, 0.0
    %v1421 = vmax.f32 %v1377, 0.0
    %v1422 = vmax.f32 %v1380, 0.0
    %v1423 = vmax.f32 %v1385, 0.0
    %v1424 = vmax.f32 %v1388, 0.0
    %v1425 = vmax.f32 %v1393, 0.0
    %v1426 = vmax.f32 %v1396, 0.0
    %v1427 = vmax.f32 %v1401, 0.0
    %v1428 = vmax.f32 %v1404, 0.0
    %v1429 = vmax.f32 %v1409, 0.0
    %v1430 = vmax.f32 %v1412, 0.0
    %v1431 = vpack.c.bf16 %v1416, %v1415
    %v1432 = vpack.c.bf16 %v1418, %v1417
    %v1433 = vpack.c.bf16 %v1420, %v1419
    %v1434 = vpack.c.bf16 %v1422, %v1421
    %v1435 = vpack.c.bf16 %v1424, %v1423
    %v1436 = vpack.c.bf16 %v1426, %v1425
    %v1437 = vpack.c.bf16 %v1428, %v1427
    %v1438 = vpack.c.bf16 %v1430, %v1429
    %v1439 = vld [vmem:[#allocation6] sm:$0xf]
    %v1440 = vld [vmem:[#allocation6 + $0x4] sm:$0xf]
    %v1441 = vld [vmem:[#allocation6 + $0x8] sm:$0xf]
    %v1442 = vld [vmem:[#allocation6 + $0xc] sm:$0xf]
    %v1443 = vld [vmem:[#allocation6 + $0x10] sm:$0xf]
    %v1444 = vld [vmem:[#allocation6 + $0x14] sm:$0xf]
    %v1445 = vld [vmem:[#allocation6 + $0x18] sm:$0xf]
    %v1446 = vld [vmem:[#allocation6 + $0x1c] sm:$0xf]
    %v1447 = vld [vmem:[#allocation6 + $0x20] sm:$0xf]
    %v1448 = vld [vmem:[#allocation6 + $0x24] sm:$0xf]
    %v1449 = vld [vmem:[#allocation6 + $0x28] sm:$0xf]
    %v1450 = vld [vmem:[#allocation6 + $0x2c] sm:$0xf]
    %v1451 = vld [vmem:[#allocation6 + $0x30] sm:$0xf]
    %v1452 = vld [vmem:[#allocation6 + $0x34] sm:$0xf]
    %v1453 = vld [vmem:[#allocation6 + $0x38] sm:$0xf]
    %v1454 = vld [vmem:[#allocation6 + $0x3c] sm:$0xf]
    %v1471 = vunpack.c.l.b16 %v1439
    %v1472 = vunpack.c.l.b16 %v1440
    %v1473 = vunpack.c.l.b16 %v1441
    %v1474 = vunpack.c.l.b16 %v1442
    %v1475 = vunpack.c.l.b16 %v1443
    %v1476 = vunpack.c.l.b16 %v1444
    %v1477 = vunpack.c.l.b16 %v1445
    %v1478 = vunpack.c.l.b16 %v1446
    %v1479 = vunpack.c.l.b16 %v1447
    %v1480 = vunpack.c.l.b16 %v1448
    %v1481 = vunpack.c.l.b16 %v1449
    %v1482 = vunpack.c.l.b16 %v1450
    %v1483 = vunpack.c.l.b16 %v1451
    %v1484 = vunpack.c.l.b16 %v1452
    %v1485 = vunpack.c.l.b16 %v1453
    %v1486 = vunpack.c.l.b16 %v1454
    %v1487 = vpack.c.b16 %v1472, %v1471
    %v1488 = vpack.c.b16 %v1474, %v1473
    %v1489 = vpack.c.b16 %v1476, %v1475
    %v1490 = vpack.c.b16 %v1478, %v1477
    %v1491 = vpack.c.b16 %v1480, %v1479
    %v1492 = vpack.c.b16 %v1482, %v1481
    %v1493 = vpack.c.b16 %v1484, %v1483
    %v1494 = vpack.c.b16 %v1486, %v1485
    %1503 = vmatprep.subr.bf16.mxu0 0
    %1504 = vmatpush1.bf16.msra.mxu0 %v1487
    %1505 = vmatprep.subr.bf16.mxu0 0
    %1506 = vmatpush1.bf16.msra.mxu0 %v1488
    %1507 = vmatprep.subr.bf16.mxu0 0
    %1508 = vmatpush1.bf16.msra.mxu0 %v1489
    %1509 = vmatprep.subr.bf16.mxu0 0
    %1510 = vmatpush1.bf16.msra.mxu0 %v1490
    %1511 = vmatprep.subr.bf16.mxu0 0
    %1512 = vmatpush1.bf16.msra.mxu0 %v1491
    %1513 = vmatprep.subr.bf16.mxu0 0
    %1514 = vmatpush1.bf16.msra.mxu0 %v1492
    %1515 = vmatprep.subr.bf16.mxu0 0
    %1516 = vmatpush1.bf16.msra.mxu0 %v1493
    %1517 = vmatprep.subr.bf16.mxu0 0
    %1518 = vmatpush1.bf16.msra.mxu0 %v1494
    %1519 = vmatprep.subr.bf16.mxu0 0
    %1520 = vmatpush1.bf16.msra.mxu0 0
    %1521 = vmatprep.subr.bf16.mxu0 0
    %1522 = vmatpush1.bf16.msra.mxu0 0
    %1523 = vmatprep.subr.bf16.mxu0 0
    %1524 = vmatpush1.bf16.msra.mxu0 0
    %1525 = vmatprep.subr.bf16.mxu0 0
    %1526 = vmatpush1.bf16.msra.mxu0 0
    %1527 = vmatprep.subr.bf16.mxu0 0
    %1528 = vmatpush1.bf16.msra.mxu0 0
    %1529 = vmatprep.subr.bf16.mxu0 0
    %1530 = vmatpush1.bf16.msra.mxu0 0
    %1531 = vmatprep.subr.bf16.mxu0 0
    %1532 = vmatpush1.bf16.msra.mxu0 0
    %1533 = vmatprep.subr.bf16.mxu0 0
    %1534 = vmatpush1.bf16.msra.mxu0 0
    %1535 = vmatprep.mubr.bf16.mxu0 0
    %1536 = vmatmul.mubr.bf16.gmra.mrb[0].mxu0 %v1431
    %v1537 = vpop.f32.mrb[0].mxu0
    %v1538 = vadd.f32 0.0, %v1537
    %v1539 = vpop.f32.mrb[0].mxu0
    %v1540 = vpop.f32.mrb[0].mxu0
    %v1541 = vadd.f32 0.0, %v1540
    %v1542 = vpop.f32.mrb[0].mxu0
    %1543 = vmatprep.mubr.bf16.mxu0 0
    %1544 = vmatmul.mubr.bf16.gmra.mrb[0].mxu0 %v1432
    %v1545 = vpop.f32.mrb[0].mxu0
    %v1546 = vadd.f32 0.0, %v1545
    %v1547 = vpop.f32.mrb[0].mxu0
    %v1548 = vpop.f32.mrb[0].mxu0
    %v1549 = vadd.f32 0.0, %v1548
    %v1550 = vpop.f32.mrb[0].mxu0
    %1551 = vmatprep.mubr.bf16.mxu0 0
    %1552 = vmatmul.mubr.bf16.gmra.mrb[0].mxu0 %v1433
    %v1553 = vpop.f32.mrb[0].mxu0
    %v1554 = vadd.f32 0.0, %v1553
    %v1555 = vpop.f32.mrb[0].mxu0
    %v1556 = vpop.f32.mrb[0].mxu0
    %v1557 = vadd.f32 0.0, %v1556
    %v1558 = vpop.f32.mrb[0].mxu0
    %1559 = vmatprep.mubr.bf16.mxu0 0
    %1560 = vmatmul.mubr.bf16.gmra.mrb[0].mxu0 %v1434
    %v1561 = vpop.f32.mrb[0].mxu0
    %v1562 = vadd.f32 0.0, %v1561
    %v1563 = vpop.f32.mrb[0].mxu0
    %v1564 = vpop.f32.mrb[0].mxu0
    %v1565 = vadd.f32 0.0, %v1564
    %v1566 = vpop.f32.mrb[0].mxu0
    %1567 = vmatprep.mubr.bf16.mxu0 0
    %1568 = vmatmul.mubr.bf16.gmra.mrb[0].mxu0 %v1435
    %v1569 = vpop.f32.mrb[0].mxu0
    %v1570 = vadd.f32 0.0, %v1569
    %v1571 = vpop.f32.mrb[0].mxu0
    %v1572 = vpop.f32.mrb[0].mxu0
    %v1573 = vadd.f32 0.0, %v1572
    %v1574 = vpop.f32.mrb[0].mxu0
    %1575 = vmatprep.mubr.bf16.mxu0 0
    %1576 = vmatmul.mubr.bf16.gmra.mrb[0].mxu0 %v1436
    %v1577 = vpop.f32.mrb[0].mxu0
    %v1578 = vadd.f32 0.0, %v1577
    %v1579 = vpop.f32.mrb[0].mxu0
    %v1580 = vpop.f32.mrb[0].mxu0
    %v1581 = vadd.f32 0.0, %v1580
    %v1582 = vpop.f32.mrb[0].mxu0
    %1583 = vmatprep.mubr.bf16.mxu0 0
    %1584 = vmatmul.mubr.bf16.gmra.mrb[0].mxu0 %v1437
    %v1585 = vpop.f32.mrb[0].mxu0
    %v1586 = vadd.f32 0.0, %v1585
    %v1587 = vpop.f32.mrb[0].mxu0
    %v1588 = vpop.f32.mrb[0].mxu0
    %v1589 = vadd.f32 0.0, %v1588
    %v1590 = vpop.f32.mrb[0].mxu0
    %1591 = vmatprep.mubr.bf16.mxu0 0
    %1592 = vmatmul.mubr.bf16.gmra.mrb[0].mxu0 %v1438
    %v1593 = vpop.f32.mrb[0].mxu0
    %v1594 = vadd.f32 0.0, %v1593
    %v1595 = vpop.f32.mrb[0].mxu0
    %v1596 = vpop.f32.mrb[0].mxu0
    %v1597 = vadd.f32 0.0, %v1596
    %v1598 = vpop.f32.mrb[0].mxu0
    %1599 = vdwg.mxu0
    %v1600 = vpack.c.bf16 %v1541, %v1538
    %v1601 = vpack.c.bf16 %v1549, %v1546
    %v1602 = vpack.c.bf16 %v1557, %v1554
    %v1603 = vpack.c.bf16 %v1565, %v1562
    %v1604 = vpack.c.bf16 %v1573, %v1570
    %v1605 = vpack.c.bf16 %v1581, %v1578
    %v1606 = vpack.c.bf16 %v1589, %v1586
    %v1607 = vpack.c.bf16 %v1597, %v1594
    %v1608 = vld [vmem:[%s12] sm:$0x1]
    %v1610 = vlaneseq
    %v1611 = vshrl.u32 %v1610, 7
    %v1612 = vsub.s32 0, %v1611
    %v1613 = vrot.slane %v1608, %v1612
    %1615 = vmatprep.subr.bf16.mxu0 0
    %1616 = vmatpush1.bf16.msra.mxu0 %v1600
    %1617 = vmatprep.subr.bf16.mxu0 0
    %1618 = vmatpush1.bf16.msra.mxu0 %v1601
    %1619 = vmatprep.subr.bf16.mxu0 0
    %1620 = vmatpush1.bf16.msra.mxu0 %v1602
    %1621 = vmatprep.subr.bf16.mxu0 0
    %1622 = vmatpush1.bf16.msra.mxu0 %v1603
    %1623 = vmatprep.subr.bf16.mxu0 0
    %1624 = vmatpush1.bf16.msra.mxu0 %v1604
    %1625 = vmatprep.subr.bf16.mxu0 0
    %1626 = vmatpush1.bf16.msra.mxu0 %v1605
    %1627 = vmatprep.subr.bf16.mxu0 0
    %1628 = vmatpush1.bf16.msra.mxu0 %v1606
    %1629 = vmatprep.subr.bf16.mxu0 0
    %1630 = vmatpush1.bf16.msra.mxu0 %v1607
    %1631 = vmatprep.subr.bf16.mxu0 0
    %1632 = vmatpush1.bf16.msra.mxu0 0
    %1633 = vmatprep.subr.bf16.mxu0 0
    %1634 = vmatpush1.bf16.msra.mxu0 0
    %1635 = vmatprep.subr.bf16.mxu0 0
    %1636 = vmatpush1.bf16.msra.mxu0 0
    %1637 = vmatprep.subr.bf16.mxu0 0
    %1638 = vmatpush1.bf16.msra.mxu0 0
    %1639 = vmatprep.subr.bf16.mxu0 0
    %1640 = vmatpush1.bf16.msra.mxu0 0
    %1641 = vmatprep.subr.bf16.mxu0 0
    %1642 = vmatpush1.bf16.msra.mxu0 0
    %1643 = vmatprep.subr.bf16.mxu0 0
    %1644 = vmatpush1.bf16.msra.mxu0 0
    %1645 = vmatprep.subr.bf16.mxu0 0
    %1646 = vmatpush1.bf16.msra.mxu0 0
    %1647 = vmatprep.mubr.bf16.mxu0 0
    %1648 = vmatmul.mubr.bf16.gmra.mrb[0].mxu0 %v411
    %v1649 = vpop.f32.mrb[0].mxu0
    %v1650 = vadd.f32 %v1613, %v1649
    %v1651 = vpop.f32.mrb[0].mxu0
    %v1652 = vpop.f32.mrb[0].mxu0
    %v1653 = vadd.f32 %v1613, %v1652
    %v1654 = vpop.f32.mrb[0].mxu0
    %1655 = vmatprep.mubr.bf16.mxu0 0
    %1656 = vmatmul.mubr.bf16.gmra.mrb[0].mxu0 %v412
    %v1657 = vpop.f32.mrb[0].mxu0
    %v1658 = vadd.f32 %v1613, %v1657
    %v1659 = vpop.f32.mrb[0].mxu0
    %v1660 = vpop.f32.mrb[0].mxu0
    %v1661 = vadd.f32 %v1613, %v1660
    %v1662 = vpop.f32.mrb[0].mxu0
    %1663 = vmatprep.mubr.bf16.mxu0 0
    %1664 = vmatmul.mubr.bf16.gmra.mrb[0].mxu0 %v413
    %v1665 = vpop.f32.mrb[0].mxu0
    %v1666 = vadd.f32 %v1613, %v1665
    %v1667 = vpop.f32.mrb[0].mxu0
    %v1668 = vpop.f32.mrb[0].mxu0
    %v1669 = vadd.f32 %v1613, %v1668
    %v1670 = vpop.f32.mrb[0].mxu0
    %1671 = vmatprep.mubr.bf16.mxu0 0
    %1672 = vmatmul.mubr.bf16.gmra.mrb[0].mxu0 %v414
    %v1673 = vpop.f32.mrb[0].mxu0
    %v1674 = vadd.f32 %v1613, %v1673
    %v1675 = vpop.f32.mrb[0].mxu0
    %v1676 = vpop.f32.mrb[0].mxu0
    %v1677 = vadd.f32 %v1613, %v1676
    %v1678 = vpop.f32.mrb[0].mxu0
    %1679 = vmatprep.mubr.bf16.mxu0 0
    %1680 = vmatmul.mubr.bf16.gmra.mrb[0].mxu0 %v415
    %v1681 = vpop.f32.mrb[0].mxu0
    %v1682 = vadd.f32 %v1613, %v1681
    %v1683 = vpop.f32.mrb[0].mxu0
    %v1684 = vpop.f32.mrb[0].mxu0
    %v1685 = vadd.f32 %v1613, %v1684
    %v1686 = vpop.f32.mrb[0].mxu0
    %1687 = vmatprep.mubr.bf16.mxu0 0
    %1688 = vmatmul.mubr.bf16.gmra.mrb[0].mxu0 %v416
    %v1689 = vpop.f32.mrb[0].mxu0
    %v1690 = vadd.f32 %v1613, %v1689
    %v1691 = vpop.f32.mrb[0].mxu0
    %v1692 = vpop.f32.mrb[0].mxu0
    %v1693 = vadd.f32 %v1613, %v1692
    %v1694 = vpop.f32.mrb[0].mxu0
    %1695 = vmatprep.mubr.bf16.mxu0 0
    %1696 = vmatmul.mubr.bf16.gmra.mrb[0].mxu0 %v417
    %v1697 = vpop.f32.mrb[0].mxu0
    %v1698 = vadd.f32 %v1613, %v1697
    %v1699 = vpop.f32.mrb[0].mxu0
    %v1700 = vpop.f32.mrb[0].mxu0
    %v1701 = vadd.f32 %v1613, %v1700
    %v1702 = vpop.f32.mrb[0].mxu0
    %1703 = vmatprep.mubr.bf16.mxu0 0
    %1704 = vmatmul.mubr.bf16.gmra.mrb[0].mxu0 %v418
    %v1705 = vpop.f32.mrb[0].mxu0
    %v1706 = vadd.f32 %v1613, %v1705
    %v1707 = vpop.f32.mrb[0].mxu0
    %v1708 = vpop.f32.mrb[0].mxu0
    %v1709 = vadd.f32 %v1613, %v1708
    %v1710 = vpop.f32.mrb[0].mxu0
    %1711 = vdwg.mxu0
    %v1712 = vmax.f32 %v1650, 0.0
    %v1713 = vmax.f32 %v1653, 0.0
    %v1714 = vmax.f32 %v1658, 0.0
    %v1715 = vmax.f32 %v1661, 0.0
    %v1716 = vmax.f32 %v1666, 0.0
    %v1717 = vmax.f32 %v1669, 0.0
    %v1718 = vmax.f32 %v1674, 0.0
    %v1719 = vmax.f32 %v1677, 0.0
    %v1720 = vmax.f32 %v1682, 0.0
    %v1721 = vmax.f32 %v1685, 0.0
    %v1722 = vmax.f32 %v1690, 0.0
    %v1723 = vmax.f32 %v1693, 0.0
    %v1724 = vmax.f32 %v1698, 0.0
    %v1725 = vmax.f32 %v1701, 0.0
    %v1726 = vmax.f32 %v1706, 0.0
    %v1727 = vmax.f32 %v1709, 0.0
    %v1728 = vpack.c.bf16 %v1713, %v1712
    %v1729 = vpack.c.bf16 %v1715, %v1714
    %v1730 = vpack.c.bf16 %v1717, %v1716
    %v1731 = vpack.c.bf16 %v1719, %v1718
    %v1732 = vpack.c.bf16 %v1721, %v1720
    %v1733 = vpack.c.bf16 %v1723, %v1722
    %v1734 = vpack.c.bf16 %v1725, %v1724
    %v1735 = vpack.c.bf16 %v1727, %v1726
    %v1736 = vld [vmem:[#allocation2] sm:$0xf]
    %1737 = vmatprep.subr.bf16.mxu0 0
    %1738 = vmatpush1.bf16.msra.mxu0 %v1728
    %1739 = vmatprep.subr.bf16.mxu0 0
    %1740 = vmatpush1.bf16.msra.mxu0 %v1729
    %1741 = vmatprep.subr.bf16.mxu0 0
    %1742 = vmatpush1.bf16.msra.mxu0 %v1730
    %1743 = vmatprep.subr.bf16.mxu0 0
    %1744 = vmatpush1.bf16.msra.mxu0 %v1731
    %1745 = vmatprep.subr.bf16.mxu0 0
    %1746 = vmatpush1.bf16.msra.mxu0 %v1732
    %1747 = vmatprep.subr.bf16.mxu0 0
    %1748 = vmatpush1.bf16.msra.mxu0 %v1733
    %1749 = vmatprep.subr.bf16.mxu0 0
    %1750 = vmatpush1.bf16.msra.mxu0 %v1734
    %1751 = vmatprep.subr.bf16.mxu0 0
    %1752 = vmatpush1.bf16.msra.mxu0 %v1735
    %1753 = vmatprep.subr.bf16.mxu0 0
    %1754 = vmatpush1.bf16.msra.mxu0 0
    %1755 = vmatprep.subr.bf16.mxu0 0
    %1756 = vmatpush1.bf16.msra.mxu0 0
    %1757 = vmatprep.subr.bf16.mxu0 0
    %1758 = vmatpush1.bf16.msra.mxu0 0
    %1759 = vmatprep.subr.bf16.mxu0 0
    %1760 = vmatpush1.bf16.msra.mxu0 0
    %1761 = vmatprep.subr.bf16.mxu0 0
    %1762 = vmatpush1.bf16.msra.mxu0 0
    %1763 = vmatprep.subr.bf16.mxu0 0
    %1764 = vmatpush1.bf16.msra.mxu0 0
    %1765 = vmatprep.subr.bf16.mxu0 0
    %1766 = vmatpush1.bf16.msra.mxu0 0
    %1767 = vmatprep.subr.bf16.mxu0 0
    %1768 = vmatpush1.bf16.msra.mxu0 0
    %1769 = vmatprep.mubr.bf16.mxu0 0
    %1770 = vmatmul.mubr.bf16.gmra.mrb[0].mxu0 %v1736
    %v1771 = vpop.f32.mrb[0].mxu0
    %v1772 = vadd.f32 0.0, %v1771
    %v1773 = vpop.f32.mrb[0].mxu0
    %v1774 = vpop.f32.mrb[0].mxu0
    %v1775 = vpop.f32.mrb[0].mxu0
    %1776 = vdwg.mxu0
    %v1777 = vpack.c.bf16 %v1772, %v1772
    %v1778 = vld [vmem:[#allocation7] sm:$0xf]
    %v1779 = vld [vmem:[#allocation7 + $0x4] sm:$0xf]
    %v1780 = vld [vmem:[#allocation7 + $0x8] sm:$0xf]
    %v1781 = vld [vmem:[#allocation7 + $0xc] sm:$0xf]
    %v1782 = vld [vmem:[#allocation7 + $0x10] sm:$0xf]
    %v1783 = vld [vmem:[#allocation7 + $0x14] sm:$0xf]
    %v1784 = vld [vmem:[#allocation7 + $0x18] sm:$0xf]
    %v1785 = vld [vmem:[#allocation7 + $0x1c] sm:$0xf]
    %v1786 = vld [vmem:[#allocation7 + $0x20] sm:$0xf]
    %v1787 = vld [vmem:[#allocation7 + $0x24] sm:$0xf]
    %v1788 = vld [vmem:[#allocation7 + $0x28] sm:$0xf]
    %v1789 = vld [vmem:[#allocation7 + $0x2c] sm:$0xf]
    %v1790 = vld [vmem:[#allocation7 + $0x30] sm:$0xf]
    %v1791 = vld [vmem:[#allocation7 + $0x34] sm:$0xf]
    %v1792 = vld [vmem:[#allocation7 + $0x38] sm:$0xf]
    %v1793 = vld [vmem:[#allocation7 + $0x3c] sm:$0xf]
    %v1794 = vld [vmem:[%s14] sm:$0x1]
    %v1796 = vlaneseq
    %v1797 = vshrl.u32 %v1796, 7
    %v1798 = vsub.s32 0, %v1797
    %v1799 = vrot.slane %v1794, %v1798
    %v1817 = vunpack.c.l.b16 %v1778
    %v1818 = vunpack.c.l.b16 %v1779
    %v1819 = vunpack.c.l.b16 %v1780
    %v1820 = vunpack.c.l.b16 %v1781
    %v1821 = vunpack.c.l.b16 %v1782
    %v1822 = vunpack.c.l.b16 %v1783
    %v1823 = vunpack.c.l.b16 %v1784
    %v1824 = vunpack.c.l.b16 %v1785
    %v1825 = vunpack.c.l.b16 %v1786
    %v1826 = vunpack.c.l.b16 %v1787
    %v1827 = vunpack.c.l.b16 %v1788
    %v1828 = vunpack.c.l.b16 %v1789
    %v1829 = vunpack.c.l.b16 %v1790
    %v1830 = vunpack.c.l.b16 %v1791
    %v1831 = vunpack.c.l.b16 %v1792
    %v1832 = vunpack.c.l.b16 %v1793
    %v1833 = vpack.c.b16 %v1818, %v1817
    %v1834 = vpack.c.b16 %v1820, %v1819
    %v1835 = vpack.c.b16 %v1822, %v1821
    %v1836 = vpack.c.b16 %v1824, %v1823
    %v1837 = vpack.c.b16 %v1826, %v1825
    %v1838 = vpack.c.b16 %v1828, %v1827
    %v1839 = vpack.c.b16 %v1830, %v1829
    %v1840 = vpack.c.b16 %v1832, %v1831
    %1849 = vmatprep.subr.bf16.mxu0 0
    %1850 = vmatpush1.bf16.msra.mxu0 %v1833
    %1851 = vmatprep.subr.bf16.mxu0 0
    %1852 = vmatpush1.bf16.msra.mxu0 %v1834
    %1853 = vmatprep.subr.bf16.mxu0 0
    %1854 = vmatpush1.bf16.msra.mxu0 %v1835
    %1855 = vmatprep.subr.bf16.mxu0 0
    %1856 = vmatpush1.bf16.msra.mxu0 %v1836
    %1857 = vmatprep.subr.bf16.mxu0 0
    %1858 = vmatpush1.bf16.msra.mxu0 %v1837
    %1859 = vmatprep.subr.bf16.mxu0 0
    %1860 = vmatpush1.bf16.msra.mxu0 %v1838
    %1861 = vmatprep.subr.bf16.mxu0 0
    %1862 = vmatpush1.bf16.msra.mxu0 %v1839
    %1863 = vmatprep.subr.bf16.mxu0 0
    %1864 = vmatpush1.bf16.msra.mxu0 %v1840
    %1865 = vmatprep.subr.bf16.mxu0 0
    %1866 = vmatpush1.bf16.msra.mxu0 0
    %1867 = vmatprep.subr.bf16.mxu0 0
    %1868 = vmatpush1.bf16.msra.mxu0 0
    %1869 = vmatprep.subr.bf16.mxu0 0
    %1870 = vmatpush1.bf16.msra.mxu0 0
    %1871 = vmatprep.subr.bf16.mxu0 0
    %1872 = vmatpush1.bf16.msra.mxu0 0
    %1873 = vmatprep.subr.bf16.mxu0 0
    %1874 = vmatpush1.bf16.msra.mxu0 0
    %1875 = vmatprep.subr.bf16.mxu0 0
    %1876 = vmatpush1.bf16.msra.mxu0 0
    %1877 = vmatprep.subr.bf16.mxu0 0
    %1878 = vmatpush1.bf16.msra.mxu0 0
    %1879 = vmatprep.subr.bf16.mxu0 0
    %1880 = vmatpush1.bf16.msra.mxu0 0
    %1881 = vmatprep.mubr.bf16.mxu0 0
    %1882 = vmatmul.mubr.bf16.gmra.mrb[0].mxu0 %v1777
    %v1883 = vpop.f32.mrb[0].mxu0
    %v1884 = vadd.f32 %v1799, %v1883
    %v1885 = vpop.f32.mrb[0].mxu0
    %v1886 = vpop.f32.mrb[0].mxu0
    %v1887 = vpop.f32.mrb[0].mxu0
    %1888 = vdwg.mxu0
    %v1889 = vmax.f32 %v1884, 0.0
    %v1890 = vpack.c.bf16 %v1889, %v1889
    %v1891 = vld [vmem:[#allocation9] sm:$0xf]
    %v1892 = vld [vmem:[#allocation9 + $0x4] sm:$0xf]
    %v1893 = vld [vmem:[#allocation9 + $0x8] sm:$0xf]
    %v1894 = vld [vmem:[#allocation9 + $0xc] sm:$0xf]
    %v1895 = vld [vmem:[#allocation9 + $0x10] sm:$0xf]
    %v1896 = vld [vmem:[#allocation9 + $0x14] sm:$0xf]
    %v1897 = vld [vmem:[#allocation9 + $0x18] sm:$0xf]
    %v1898 = vld [vmem:[#allocation9 + $0x1c] sm:$0xf]
    %v1899 = vld [vmem:[#allocation9 + $0x20] sm:$0xf]
    %v1900 = vld [vmem:[#allocation9 + $0x24] sm:$0xf]
    %v1901 = vld [vmem:[#allocation9 + $0x28] sm:$0xf]
    %v1902 = vld [vmem:[#allocation9 + $0x2c] sm:$0xf]
    %v1903 = vld [vmem:[#allocation9 + $0x30] sm:$0xf]
    %v1904 = vld [vmem:[#allocation9 + $0x34] sm:$0xf]
    %v1905 = vld [vmem:[#allocation9 + $0x38] sm:$0xf]
    %v1906 = vld [vmem:[#allocation9 + $0x3c] sm:$0xf]
    %v1907 = vld [vmem:[%s16] sm:$0x1]
    %v1909 = vlaneseq
    %v1910 = vshrl.u32 %v1909, 7
    %v1911 = vsub.s32 0, %v1910
    %v1912 = vrot.slane %v1907, %v1911
    %v1930 = vunpack.c.l.b16 %v1891
    %v1931 = vunpack.c.l.b16 %v1892
    %v1932 = vunpack.c.l.b16 %v1893
    %v1933 = vunpack.c.l.b16 %v1894
    %v1934 = vunpack.c.l.b16 %v1895
    %v1935 = vunpack.c.l.b16 %v1896
    %v1936 = vunpack.c.l.b16 %v1897
    %v1937 = vunpack.c.l.b16 %v1898
    %v1938 = vunpack.c.l.b16 %v1899
    %v1939 = vunpack.c.l.b16 %v1900
    %v1940 = vunpack.c.l.b16 %v1901
    %v1941 = vunpack.c.l.b16 %v1902
    %v1942 = vunpack.c.l.b16 %v1903
    %v1943 = vunpack.c.l.b16 %v1904
    %v1944 = vunpack.c.l.b16 %v1905
    %v1945 = vunpack.c.l.b16 %v1906
    %v1946 = vpack.c.b16 %v1931, %v1930
    %v1947 = vpack.c.b16 %v1933, %v1932
    %v1948 = vpack.c.b16 %v1935, %v1934
    %v1949 = vpack.c.b16 %v1937, %v1936
    %v1950 = vpack.c.b16 %v1939, %v1938
    %v1951 = vpack.c.b16 %v1941, %v1940
    %v1952 = vpack.c.b16 %v1943, %v1942
    %v1953 = vpack.c.b16 %v1945, %v1944
    %1962 = vmatprep.subr.bf16.mxu0 0
    %1963 = vmatpush1.bf16.msra.mxu0 %v1946
    %1964 = vmatprep.subr.bf16.mxu0 0
    %1965 = vmatpush1.bf16.msra.mxu0 %v1947
    %1966 = vmatprep.subr.bf16.mxu0 0
    %1967 = vmatpush1.bf16.msra.mxu0 %v1948
    %1968 = vmatprep.subr.bf16.mxu0 0
    %1969 = vmatpush1.bf16.msra.mxu0 %v1949
    %1970 = vmatprep.subr.bf16.mxu0 0
    %1971 = vmatpush1.bf16.msra.mxu0 %v1950
    %1972 = vmatprep.subr.bf16.mxu0 0
    %1973 = vmatpush1.bf16.msra.mxu0 %v1951
    %1974 = vmatprep.subr.bf16.mxu0 0
    %1975 = vmatpush1.bf16.msra.mxu0 %v1952
    %1976 = vmatprep.subr.bf16.mxu0 0
    %1977 = vmatpush1.bf16.msra.mxu0 %v1953
    %1978 = vmatprep.subr.bf16.mxu0 0
    %1979 = vmatpush1.bf16.msra.mxu0 0
    %1980 = vmatprep.subr.bf16.mxu0 0
    %1981 = vmatpush1.bf16.msra.mxu0 0
    %1982 = vmatprep.subr.bf16.mxu0 0
    %1983 = vmatpush1.bf16.msra.mxu0 0
    %1984 = vmatprep.subr.bf16.mxu0 0
    %1985 = vmatpush1.bf16.msra.mxu0 0
    %1986 = vmatprep.subr.bf16.mxu0 0
    %1987 = vmatpush1.bf16.msra.mxu0 0
    %1988 = vmatprep.subr.bf16.mxu0 0
    %1989 = vmatpush1.bf16.msra.mxu0 0
    %1990 = vmatprep.subr.bf16.mxu0 0
    %1991 = vmatpush1.bf16.msra.mxu0 0
    %1992 = vmatprep.subr.bf16.mxu0 0
    %1993 = vmatpush1.bf16.msra.mxu0 0
    %1994 = vmatprep.mubr.bf16.mxu0 0
    %1995 = vmatmul.mubr.bf16.gmra.mrb[0].mxu0 %v1890
    %v1996 = vpop.f32.mrb[0].mxu0
    %v1997 = vadd.f32 %v1912, %v1996
    %v1998 = vpop.f32.mrb[0].mxu0
    %v1999 = vpop.f32.mrb[0].mxu0
    %v2000 = vpop.f32.mrb[0].mxu0
    %2001 = vdwg.mxu0
    %2002 = vst [vmem:[%s17] sm:$0xff] %v1997
    // Predicated region
    $region90: #{_forward.1} parent=1 // pred_check
      _
    $region91: #{_forward.1} parent=1 // pred_check_branch
      %2004 = sbr.rel (0) target = $region93
    $region92: #{_forward.1} parent=1 // pred_region
      _
    $region93: #{_forward.1} parent=1 // pred_fallthru
      _
    // Predicated region
    $region94: #{_forward.1} parent=1 // pred_check
      _
    $region95: #{_forward.1} parent=1 // pred_check_branch
      %2006 = sbr.rel (0) target = $region97
    $region96: #{_forward.1} parent=1 // pred_region
      _
    $region97: #{_forward.1} parent=1 // pred_fallthru
      _
    %2007 = vsyncpa [#allocation3], 1
    %2008 = vsyncpa [#allocation5], 1
    %2009 = vsyncpa [#allocation8], 1

</llo_original>
